<compile_context>
chip_gen: v7x
topology: tpu7x:2x2x1
jax: 0.10.0
libtpu: 0.0.40
codegen_flags: <defaults>
</compile_context>

<pallas_src>
import functools

import jax
import jax.numpy as jnp
from jax import lax
from jax.experimental import pallas as pl
from jax.experimental.pallas import tpu as pltpu


def _embedding_kernel(tok_ref, a_ref, w2_ref, b2_ref, out_ref, *,
                      num_classes, L, K, L1, L2, C16):
    tok = tok_ref[...]                                            # (L, TB) int32
    tb = tok.shape[1]

    # --- one-hot, classes on the leading (outer) axis: (C, L, TB) ---
    cls = lax.broadcasted_iota(jnp.int32, (num_classes, L, tb), 0)
    oh = (tok[None, :, :] == cls).astype(jnp.float32)             # (C, L, TB)
    oh_flat = oh.reshape(num_classes * L, tb)                     # (C*L, TB), row = c*L + l

    # --- one-hot + Conv1d(num_classes -> 16, K) + bias fused into ONE matmul ---
    y1 = jnp.dot(a_ref[...], oh_flat,
                 preferred_element_type=jnp.float32,
                 precision=lax.Precision.HIGHEST)                 # (L1*16, TB), row = p*16 + o
    y1 = jnp.where(y1 >= 0, y1, 0.01 * y1)                        # LeakyReLU
    y1 = y1.reshape(L1, C16, tb)                                  # (L1, 16, TB)

    # --- MaxPool1d(kernel_size=K, stride=1) over positions (outer-axis slices) ---
    y2 = y1[0:L2]
    for k in range(1, K):
        y2 = jnp.maximum(y2, y1[k:k + L2])                        # (L2, 16, TB)

    # --- Conv1d(16 -> O, kernel_size=L2): single output position, ONE matmul ---
    y2_flat = y2.reshape(L2 * C16, tb)                            # row = p*16 + c
    z = jnp.dot(w2_ref[...], y2_flat,
                preferred_element_type=jnp.float32,
                precision=lax.Precision.HIGHEST)                  # (O, TB)
    z = z + b2_ref[...]
    out_ref[...] = jnp.where(z >= 0, z, 0.01 * z)                 # LeakyReLU


@functools.partial(jax.jit, static_argnames=("num_classes", "kernel_size"))
def embedding_layer_pallas(tokens, w1, b1, w2, b2, *, num_classes, kernel_size):
    """tokens: (B, L) int; w1: (16, C, K); b1: (16,); w2: (O, 16, L2); b2: (O,)."""
    B, L = tokens.shape
    K = kernel_size
    C16 = w1.shape[0]                      # 16 intermediate channels
    O = w2.shape[0]                        # out_features
    L1 = L - (K - 1)                       # after conv1
    L2 = L1 - (K - 1)                      # after maxpool (stride=1)
    assert w2.shape[2] == L2, "conv2 kernel size must equal in_feature - 2*(K-1)"

    # Batch tile: multiple of 128 lanes, up to 1024 per grid step (intermediates are tiny,
    # larger tiles amortize per-grid-step overhead).
    TB = min(1024, ((B + 127) // 128) * 128)
    B_pad = ((B + TB - 1) // TB) * TB
    n_tiles = B_pad // TB

    tok_t = jnp.transpose(tokens.astype(jnp.int32), (1, 0))       # (L, B)
    if B_pad != B:
        tok_t = jnp.pad(tok_t, ((0, 0), (0, B_pad - B)))          # pad with class 0 (discarded)

    # Toeplitz-expanded conv1 weights: A[p*16 + o, c*L + l] = w1[o, c, l - p] (0 elsewhere)
    w1f = w1.astype(jnp.float32)
    rows = []
    for p in range(L1):
        rows.append(jnp.pad(w1f, ((0, 0), (0, 0), (p, L - K - p))))   # (16, C, L)
    A = jnp.stack(rows, axis=0)                                       # (L1, 16, C, L)
    # Fold the conv1 bias into A: for each position the one-hot sums to 1 over classes,
    # so adding b1[o] at (l = 0, every class c) contributes exactly b1[o] per output row.
    bias_blk = jnp.zeros((L1, C16, num_classes, L), jnp.float32)
    bias_blk = bias_blk.at[:, :, :, 0].add(b1.astype(jnp.float32)[None, :, None])
    A = (A + bias_blk).reshape(L1 * C16, num_classes * L)             # (L1*16, C*L)

    # conv2 weights flattened so column index = pos*16 + channel
    w2_k = jnp.transpose(w2.astype(jnp.float32), (0, 2, 1)).reshape(O, L2 * C16)
    b2_k = b2.astype(jnp.float32).reshape(O, 1)

    kernel = functools.partial(_embedding_kernel, num_classes=num_classes,
                               L=L, K=K, L1=L1, L2=L2, C16=C16)

    out = pl.pallas_call(
        kernel,
        out_shape=jax.ShapeDtypeStruct((O, B_pad), jnp.float32),
        grid=(n_tiles,),
        in_specs=[
            pl.BlockSpec((L, TB), lambda j: (0, j)),                       # tokens
            pl.BlockSpec((L1 * C16, num_classes * L), lambda j: (0, 0)),   # A (resident)
            pl.BlockSpec((O, L2 * C16), lambda j: (0, 0)),                 # w2_flat (resident)
            pl.BlockSpec((O, 1), lambda j: (0, 0)),                        # b2 (resident)
        ],
        out_specs=pl.BlockSpec((O, TB), lambda j: (0, j)),
        compiler_params=pltpu.CompilerParams(dimension_semantics=("parallel",)),
    )(tok_t, A, w2_k, b2_k)

    return jnp.transpose(out[:, :B], (1, 0))                      # (B, O)


def embedding_layer_ref(tokens, w1, b1, w2, b2, *, num_classes, kernel_size):
    """Pure-JAX reference of the torch forward pass."""
    x = jax.nn.one_hot(tokens, num_classes, dtype=jnp.float32)    # (B, L, C)
    x = jnp.transpose(x, (0, 2, 1))                               # (B, C, L)
    dn = ('NCH', 'OIH', 'NCH')
    y = lax.conv_general_dilated(x, w1, (1,), 'VALID', dimension_numbers=dn,
                                 precision=lax.Precision.HIGHEST)
    y = y + b1[None, :, None]
    y = jnp.where(y >= 0, y, 0.01 * y)
    y = lax.reduce_window(y, -jnp.inf, lax.max,
                          (1, 1, kernel_size), (1, 1, 1), 'VALID')
    y = lax.conv_general_dilated(y, w2, (1,), 'VALID', dimension_numbers=dn,
                                 precision=lax.Precision.HIGHEST)
    y = y + b2[None, :, None]
    y = jnp.where(y >= 0, y, 0.01 * y)
    return jnp.squeeze(y, axis=-1)


if __name__ == "__main__":
    # Small, forward-consistent shapes.
    num_classes = 4
    in_feature = 16          # sequence length L
    out_features = 32
    kernel_size = 5
    batch = 2
    L2 = in_feature - 2 * (kernel_size - 1)   # conv2 kernel size (=8)

    key = jax.random.PRNGKey(0)
    k_tok, k_w1, k_b1, k_w2, k_b2 = jax.random.split(key, 5)
    tokens = jax.random.randint(k_tok, (batch, in_feature), 0, num_classes,
                                dtype=jnp.int32)
    w1 = jax.random.normal(k_w1, (16, num_classes, kernel_size), jnp.float32) * 0.1
    b1 = jax.random.normal(k_b1, (16,), jnp.float32) * 0.1
    w2 = jax.random.normal(k_w2, (out_features, 16, L2), jnp.float32) * 0.1
    b2 = jax.random.normal(k_b2, (out_features,), jnp.float32) * 0.1

    out = embedding_layer_pallas(tokens, w1, b1, w2, b2,
                                 num_classes=num_classes, kernel_size=kernel_size)
    out = jax.block_until_ready(out)

    ref = embedding_layer_ref(tokens, w1, b1, w2, b2,
                              num_classes=num_classes, kernel_size=kernel_size)
    assert out.shape == (batch, out_features), out.shape
    assert jnp.allclose(out, ref, rtol=1e-4, atol=1e-4), \
        f"max abs err = {jnp.max(jnp.abs(out - ref))}"
    print("KERNEL_OK")
</pallas_src>

<mosaic_0001>
module attributes {stable_mosaic.version = 11 : i64} {
  func.func @_embedding_kernel(%arg0: i32, %arg1: memref<16x128xi32, #tpu.memory_space<vmem>>, %arg2: memref<192x64xf32, #tpu.memory_space<vmem>>, %arg3: memref<32x128xf32, #tpu.memory_space<vmem>>, %arg4: memref<32x1xf32, #tpu.memory_space<vmem>>, %arg5: memref<32x128xf32, #tpu.memory_space<vmem>>) attributes {dimension_semantics = [#tpu.dimension_semantics<parallel>], iteration_bounds = array<i64: 1>, scalar_prefetch = 0 : i64, scratch_operands = 0 : i64, tpu.core_type = #tpu.core_type<tc>, window_params = [{transform_indices = @transform_0, window_bounds = array<i64: 16, 128>}, {pipeline_mode = #tpu.pipeline_mode<synchronous>, transform_indices = @transform_1, window_bounds = array<i64: 192, 64>}, {pipeline_mode = #tpu.pipeline_mode<synchronous>, transform_indices = @transform_2, window_bounds = array<i64: 32, 128>}, {pipeline_mode = #tpu.pipeline_mode<synchronous>, transform_indices = @transform_3, window_bounds = array<i64: 32, 1>}, {transform_indices = @transform_4, window_bounds = array<i64: 32, 128>}]} {
    %c0 = arith.constant 0 : index
    %c0_0 = arith.constant 0 : index
    %0 = vector.load %arg1[%c0, %c0_0] : memref<16x128xi32, #tpu.memory_space<vmem>>, vector<16x128xi32>
    %1 = tpu.iota {dimensions = array<i32: 0>} : vector<4x16x128xi32>
    %2 = vector.shape_cast %0 : vector<16x128xi32> to vector<1x16x128xi32>
    %3 = vector.broadcast %2 : vector<1x16x128xi32> to vector<4x16x128xi32>
    %4 = arith.cmpi eq, %3, %1 : vector<4x16x128xi32>
    %5 = arith.extui %4 : vector<4x16x128xi1> to vector<4x16x128xi32>
    %6 = arith.sitofp %5 : vector<4x16x128xi32> to vector<4x16x128xf32>
    %7 = vector.shape_cast %6 : vector<4x16x128xf32> to vector<64x128xf32>
    %c0_1 = arith.constant 0 : index
    %c0_2 = arith.constant 0 : index
    %8 = vector.load %arg2[%c0_1, %c0_2] : memref<192x64xf32, #tpu.memory_space<vmem>>, vector<192x64xf32>
    %cst = arith.constant dense<0.000000e+00> : vector<192x128xf32>
    %9 = tpu.matmul %8, %7, %cst {dimension_numbers = #tpu.dot_dimension_numbers<[1], [0], [0], [1], [0, 0, 1, 1], [], []>, precision = #tpu.contract_precision<fp32>} : vector<192x64xf32>, vector<64x128xf32>, vector<192x128xf32> -> vector<192x128xf32>
    %cst_3 = arith.constant 0.000000e+00 : f32
    %10 = vector.broadcast %cst_3 : f32 to vector<192x128xf32>
    %11 = arith.cmpf oge, %9, %10 : vector<192x128xf32>
    %cst_4 = arith.constant 0.00999999977 : f32
    %12 = vector.broadcast %cst_4 : f32 to vector<192x128xf32>
    %13 = arith.mulf %12, %9 : vector<192x128xf32>
    %14 = arith.select %11, %9, %13 : vector<192x128xi1>, vector<192x128xf32>
    %15 = vector.shape_cast %14 : vector<192x128xf32> to vector<12x16x128xf32>
    %16 = vector.extract_strided_slice %15 {offsets = [0, 0, 0], sizes = [8, 16, 128], strides = [1, 1, 1]} : vector<12x16x128xf32> to vector<8x16x128xf32>
    %17 = vector.extract_strided_slice %15 {offsets = [1, 0, 0], sizes = [8, 16, 128], strides = [1, 1, 1]} : vector<12x16x128xf32> to vector<8x16x128xf32>
    %18 = arith.maximumf %16, %17 : vector<8x16x128xf32>
    %19 = vector.extract_strided_slice %15 {offsets = [2, 0, 0], sizes = [8, 16, 128], strides = [1, 1, 1]} : vector<12x16x128xf32> to vector<8x16x128xf32>
    %20 = arith.maximumf %18, %19 : vector<8x16x128xf32>
    %21 = vector.extract_strided_slice %15 {offsets = [3, 0, 0], sizes = [8, 16, 128], strides = [1, 1, 1]} : vector<12x16x128xf32> to vector<8x16x128xf32>
    %22 = arith.maximumf %20, %21 : vector<8x16x128xf32>
    %23 = vector.extract_strided_slice %15 {offsets = [4, 0, 0], sizes = [8, 16, 128], strides = [1, 1, 1]} : vector<12x16x128xf32> to vector<8x16x128xf32>
    %24 = arith.maximumf %22, %23 : vector<8x16x128xf32>
    %25 = vector.shape_cast %24 : vector<8x16x128xf32> to vector<128x128xf32>
    %c0_5 = arith.constant 0 : index
    %c0_6 = arith.constant 0 : index
    %26 = vector.load %arg3[%c0_5, %c0_6] : memref<32x128xf32, #tpu.memory_space<vmem>>, vector<32x128xf32>
    %cst_7 = arith.constant dense<0.000000e+00> : vector<32x128xf32>
    %27 = tpu.matmul %26, %25, %cst_7 {dimension_numbers = #tpu.dot_dimension_numbers<[1], [0], [0], [1], [0, 0, 1, 1], [], []>, precision = #tpu.contract_precision<fp32>} : vector<32x128xf32>, vector<128x128xf32>, vector<32x128xf32> -> vector<32x128xf32>
    %c0_8 = arith.constant 0 : index
    %c0_9 = arith.constant 0 : index
    %28 = vector.load %arg4[%c0_8, %c0_9] : memref<32x1xf32, #tpu.memory_space<vmem>>, vector<32x1xf32>
    %29 = vector.broadcast %28 : vector<32x1xf32> to vector<32x128xf32>
    %30 = arith.addf %27, %29 : vector<32x128xf32>
    %cst_10 = arith.constant 0.000000e+00 : f32
    %31 = vector.broadcast %cst_10 : f32 to vector<32x128xf32>
    %32 = arith.cmpf oge, %30, %31 : vector<32x128xf32>
    %cst_11 = arith.constant 0.00999999977 : f32
    %33 = vector.broadcast %cst_11 : f32 to vector<32x128xf32>
    %34 = arith.mulf %33, %30 : vector<32x128xf32>
    %35 = arith.select %32, %30, %34 : vector<32x128xi1>, vector<32x128xf32>
    %c0_12 = arith.constant 0 : index
    %c0_13 = arith.constant 0 : index
    %36 = vector.load %arg5[%c0_12, %c0_13] : memref<32x128xf32, #tpu.memory_space<vmem>>, vector<32x128xf32>
    tpu.vector_store %arg5[%c0_12, %c0_13], %35 {strides = array<i32>} : memref<32x128xf32, #tpu.memory_space<vmem>>, vector<32x128xf32>,
    return
  }
  func.func @transform_0(%arg0: i32) -> (i32, i32) {
    %c0_i32 = arith.constant 0 : i32
    %c0_i32_0 = arith.constant 0 : i32
    return %c0_i32, %arg0 : i32, i32
  }
  func.func @transform_1(%arg0: i32) -> (i32, i32) {
    %c0_i32 = arith.constant 0 : i32
    %c0_i32_0 = arith.constant 0 : i32
    %c0_i32_1 = arith.constant 0 : i32
    return %c0_i32, %c0_i32_0 : i32, i32
  }
  func.func @transform_2(%arg0: i32) -> (i32, i32) {
    %c0_i32 = arith.constant 0 : i32
    %c0_i32_0 = arith.constant 0 : i32
    %c0_i32_1 = arith.constant 0 : i32
    return %c0_i32, %c0_i32_0 : i32, i32
  }
  func.func @transform_3(%arg0: i32) -> (i32, i32) {
    %c0_i32 = arith.constant 0 : i32
    %c0_i32_0 = arith.constant 0 : i32
    %c0_i32_1 = arith.constant 0 : i32
    return %c0_i32, %c0_i32_0 : i32, i32
  }
  func.func @transform_4(%arg0: i32) -> (i32, i32) {
    %c0_i32 = arith.constant 0 : i32
    %c0_i32_0 = arith.constant 0 : i32
    return %c0_i32, %arg0 : i32, i32
  }
}

</mosaic_0001>

<llo_original>
// kernel: embedding_layer_pallas.1
$region0: #{embedding_layer_pallas.1}
  #allocation0 [shape = 'u32[]', space=smem, size = 0x4, offset = 0x4, fixed_abs, tag = 'smem constant byte address 0x4 - core index']
  #allocation1 [shape = 'u32[144,128]{1,0:T(1,128)}', space=vmem, size = 0x12000, scoped, tag = 'internal scratch']
  %s0 = inlined_call_operand.vmem [shape: s32[16,128], index: 0, kind: input, shape index: {}]
  %s1 = inlined_call_operand.vmem [shape: f32[192,64], index: 1, kind: input, shape index: {}]
  %s2 = inlined_call_operand.vmem [shape: f32[32,128], index: 2, kind: input, shape index: {}]
  %s3 = inlined_call_operand.vmem [shape: f32[32,1], index: 3, kind: input, shape index: {}]
  %s4 = inlined_call_operand.vmem [shape: f32[32,128], index: 4, kind: output, shape index: {}]
  %s5 = sld [smem:[#allocation0]]
  $region26: #{embedding_layer_pallas.1} parent=0
    _
  %s7 = ssub.s32 1, %s5
  %s8 = scalar_select 0, %s7, %s5
  // Predicated region
  $region2: #{embedding_layer_pallas.1} parent=0 // pred_check
    _
  $region3: #{embedding_layer_pallas.1} parent=0 // pred_check_branch
    %10 = sbr.rel (0) target = $region5
  $region4: #{embedding_layer_pallas.1} parent=0 // pred_region
    _
  $region5: #{embedding_layer_pallas.1} parent=0 // pred_fallthru
    _
  // Predicated region
  $region6: #{embedding_layer_pallas.1} parent=0 // pred_check
    _
  $region7: #{embedding_layer_pallas.1} parent=0 // pred_check_branch
    %12 = sbr.rel (0) target = $region9
  $region8: #{embedding_layer_pallas.1} parent=0 // pred_region
    _
  $region9: #{embedding_layer_pallas.1} parent=0 // pred_fallthru
    _
  // Predicated region
  $region10: #{embedding_layer_pallas.1} parent=0 // pred_check
    _
  $region11: #{embedding_layer_pallas.1} parent=0 // pred_check_branch
    %14 = sbr.rel (0) target = $region13
  $region12: #{embedding_layer_pallas.1} parent=0 // pred_region
    _
  $region13: #{embedding_layer_pallas.1} parent=0 // pred_fallthru
    _
  // Predicated region
  $region14: #{embedding_layer_pallas.1} parent=0 // pred_check
    _
  $region15: #{embedding_layer_pallas.1} parent=0 // pred_check_branch
    %16 = sbr.rel (0) target = $region17
  $region16: #{embedding_layer_pallas.1} parent=0 // pred_region
    _
  $region17: #{embedding_layer_pallas.1} parent=0 // pred_fallthru
    _
  %v17 = vld [vmem:[%s0] sm:$0xff]
  %v18 = vld [vmem:[%s0 + $0x8] sm:$0xff]
  %vm19 = vcmp.eq.s32.totalorder %v17, 0
  %vm20 = vcmp.eq.s32.totalorder %v18, 0
  %vm21 = vcmp.eq.s32.totalorder %v17, 1
  %vm22 = vcmp.eq.s32.totalorder %v18, 1
  %vm23 = vcmp.eq.s32.totalorder %v17, 2
  %vm24 = vcmp.eq.s32.totalorder %v18, 2
  %vm25 = vcmp.eq.s32.totalorder %v17, 3
  %vm26 = vcmp.eq.s32.totalorder %v18, 3
  %v27 = vsel %vm19, 1, 0
  %v28 = vsel %vm20, 1, 0
  %v29 = vsel %vm21, 1, 0
  %v30 = vsel %vm22, 1, 0
  %v31 = vsel %vm23, 1, 0
  %v32 = vsel %vm24, 1, 0
  %v33 = vsel %vm25, 1, 0
  %v34 = vsel %vm26, 1, 0
  %v35 = vcvt.s32.f32 %v27
  %v36 = vcvt.s32.f32 %v28
  %v37 = vcvt.s32.f32 %v29
  %v38 = vcvt.s32.f32 %v30
  %v39 = vcvt.s32.f32 %v31
  %v40 = vcvt.s32.f32 %v32
  %v41 = vcvt.s32.f32 %v33
  %v42 = vcvt.s32.f32 %v34
  %v43 = vld [vmem:[%s1] sm:$0xff]
  %v44 = vld [vmem:[%s1 + $0x8] sm:$0xff]
  %v45 = vld [vmem:[%s1 + $0x10] sm:$0xff]
  %v46 = vld [vmem:[%s1 + $0x18] sm:$0xff]
  %v47 = vld [vmem:[%s1 + $0x20] sm:$0xff]
  %v48 = vld [vmem:[%s1 + $0x28] sm:$0xff]
  %v49 = vld [vmem:[%s1 + $0x30] sm:$0xff]
  %v50 = vld [vmem:[%s1 + $0x38] sm:$0xff]
  %v51 = vld [vmem:[%s1 + $0x40] sm:$0xff]
  %v52 = vld [vmem:[%s1 + $0x48] sm:$0xff]
  %v53 = vld [vmem:[%s1 + $0x50] sm:$0xff]
  %v54 = vld [vmem:[%s1 + $0x58] sm:$0xff]
  %v55 = vld [vmem:[%s1 + $0x60] sm:$0xff]
  %v56 = vld [vmem:[%s1 + $0x68] sm:$0xff]
  %v57 = vld [vmem:[%s1 + $0x70] sm:$0xff]
  %v58 = vld [vmem:[%s1 + $0x78] sm:$0xff]
  %v59 = vld [vmem:[%s1 + $0x80] sm:$0xff]
  %v60 = vld [vmem:[%s1 + $0x88] sm:$0xff]
  %v61 = vld [vmem:[%s1 + $0x90] sm:$0xff]
  %v62 = vld [vmem:[%s1 + $0x98] sm:$0xff]
  %v63 = vld [vmem:[%s1 + $0xa0] sm:$0xff]
  %v64 = vld [vmem:[%s1 + $0xa8] sm:$0xff]
  %v65 = vld [vmem:[%s1 + $0xb0] sm:$0xff]
  %v66 = vld [vmem:[%s1 + $0xb8] sm:$0xff]
  %vm67 = vcmask 523264
  %v69 = vsel %vm67, %v43, 0
  %v72 = vsel %vm67, %v44, 0
  %v75 = vsel %vm67, %v45, 0
  %v78 = vsel %vm67, %v46, 0
  %v81 = vsel %vm67, %v47, 0
  %v84 = vsel %vm67, %v48, 0
  %v87 = vsel %vm67, %v49, 0
  %v90 = vsel %vm67, %v50, 0
  %v93 = vsel %vm67, %v51, 0
  %v96 = vsel %vm67, %v52, 0
  %v99 = vsel %vm67, %v53, 0
  %v102 = vsel %vm67, %v54, 0
  %v105 = vsel %vm67, %v55, 0
  %v108 = vsel %vm67, %v56, 0
  %v111 = vsel %vm67, %v57, 0
  %v114 = vsel %vm67, %v58, 0
  %v117 = vsel %vm67, %v59, 0
  %v120 = vsel %vm67, %v60, 0
  %v123 = vsel %vm67, %v61, 0
  %v126 = vsel %vm67, %v62, 0
  %v129 = vsel %vm67, %v63, 0
  %v132 = vsel %vm67, %v64, 0
  %v135 = vsel %vm67, %v65, 0
  %v138 = vsel %vm67, %v66, 0
  %140 = vmatprep.subr.mxu0 0.0
  %v141 = vand.u32 %v35, 4294901760
  %142 = vmatpush1.msra.mxu0 %v141
  %143 = vmatprep.subr.mxu0 0.0
  %v144 = vand.u32 %v36, 4294901760
  %145 = vmatpush1.msra.mxu0 %v144
  %146 = vmatprep.subr.mxu0 0.0
  %v147 = vand.u32 %v37, 4294901760
  %148 = vmatpush1.msra.mxu0 %v147
  %149 = vmatprep.subr.mxu0 0.0
  %v150 = vand.u32 %v38, 4294901760
  %151 = vmatpush1.msra.mxu0 %v150
  %152 = vmatprep.subr.mxu0 0.0
  %v153 = vand.u32 %v39, 4294901760
  %154 = vmatpush1.msra.mxu0 %v153
  %155 = vmatprep.subr.mxu0 0.0
  %v156 = vand.u32 %v40, 4294901760
  %157 = vmatpush1.msra.mxu0 %v156
  %158 = vmatprep.subr.mxu0 0.0
  %v159 = vand.u32 %v41, 4294901760
  %160 = vmatpush1.msra.mxu0 %v159
  %161 = vmatprep.subr.mxu0 0.0
  %v162 = vand.u32 %v42, 4294901760
  %163 = vmatpush1.msra.mxu0 %v162
  %164 = vmatprep.subr.mxu0 0.0
  %165 = vmatpush1.msra.mxu0 0.0
  %166 = vmatprep.subr.mxu0 0.0
  %167 = vmatpush1.msra.mxu0 0.0
  %168 = vmatprep.subr.mxu0 0.0
  %169 = vmatpush1.msra.mxu0 0.0
  %170 = vmatprep.subr.mxu0 0.0
  %171 = vmatpush1.msra.mxu0 0.0
  %172 = vmatprep.subr.mxu0 0.0
  %173 = vmatpush1.msra.mxu0 0.0
  %174 = vmatprep.subr.mxu0 0.0
  %175 = vmatpush1.msra.mxu0 0.0
  %176 = vmatprep.subr.mxu0 0.0
  %177 = vmatpush1.msra.mxu0 0.0
  %178 = vmatprep.subr.mxu0 0.0
  %179 = vmatpush1.msra.mxu0 0.0
  %180 = vmatprep.subr.mxu0 0.0
  %181 = vmatpush1.msra.mxu0 0.0
  %182 = vmatprep.subr.mxu0 0.0
  %183 = vmatpush1.msra.mxu0 0.0
  %184 = vmatprep.subr.mxu0 0.0
  %185 = vmatpush1.msra.mxu0 0.0
  %186 = vmatprep.subr.mxu0 0.0
  %187 = vmatpush1.msra.mxu0 0.0
  %188 = vmatprep.subr.mxu0 0.0
  %189 = vmatpush1.msra.mxu0 0.0
  %190 = vmatprep.subr.mxu0 0.0
  %191 = vmatpush1.msra.mxu0 0.0
  %192 = vmatprep.subr.mxu0 0.0
  %193 = vmatpush1.msra.mxu0 0.0
  %194 = vmatprep.subr.mxu0 0.0
  %195 = vmatpush1.msra.mxu0 0.0
  %196 = vmatprep.subr.mxu0 0.0
  %197 = vmatpush1.msra.mxu0 0.0
  %198 = vmatprep.subr.mxu0 0.0
  %199 = vmatpush1.msra.mxu0 0.0
  %200 = vmatprep.subr.mxu0 0.0
  %201 = vmatpush1.msra.mxu0 0.0
  %202 = vmatprep.subr.mxu0 0.0
  %203 = vmatpush1.msra.mxu0 0.0
  %204 = vmatprep.subr.mxu0 0.0
  %205 = vmatpush1.msra.mxu0 0.0
  %206 = vmatprep.subr.mxu0 0.0
  %207 = vmatpush1.msra.mxu0 0.0
  %208 = vmatprep.subr.mxu0 0.0
  %209 = vmatpush1.msra.mxu0 0.0
  %210 = vmatprep.subr.mxu0 0.0
  %211 = vmatpush1.msra.mxu0 0.0
  %212 = vmatprep.mubr.f32.mxu0 0.0
  %v213 = vand.u32 %v69, 4294901760
  %v214 = vsub.f32 %v69, %v213
  %v215 = vand.u32 %v214, 4294901760
  %v216 = vsub.f32 %v214, %v215
  %v217 = vand.u32 %v216, 4294901760
  %218 = vmatmul.mubr.f32.gmra.mrb[0].mxu0 %v217
  %v219 = vpop.f32.mrb[0].mxu0
  %v220 = vadd.f32 0.0, %v219
  %v221 = vpop.f32.mrb[0].mxu0
  %222 = vmatprep.mubr.f32.mxu0 0.0
  %v223 = vand.u32 %v72, 4294901760
  %v224 = vsub.f32 %v72, %v223
  %v225 = vand.u32 %v224, 4294901760
  %v226 = vsub.f32 %v224, %v225
  %v227 = vand.u32 %v226, 4294901760
  %228 = vmatmul.mubr.f32.gmra.mrb[0].mxu0 %v227
  %v229 = vpop.f32.mrb[0].mxu0
  %v230 = vadd.f32 0.0, %v229
  %v231 = vpop.f32.mrb[0].mxu0
  %232 = vmatprep.mubr.f32.mxu0 0.0
  %v233 = vand.u32 %v75, 4294901760
  %v234 = vsub.f32 %v75, %v233
  %v235 = vand.u32 %v234, 4294901760
  %v236 = vsub.f32 %v234, %v235
  %v237 = vand.u32 %v236, 4294901760
  %238 = vmatmul.mubr.f32.gmra.mrb[0].mxu0 %v237
  %v239 = vpop.f32.mrb[0].mxu0
  %v240 = vadd.f32 0.0, %v239
  %v241 = vpop.f32.mrb[0].mxu0
  %242 = vmatprep.mubr.f32.mxu0 0.0
  %v243 = vand.u32 %v78, 4294901760
  %v244 = vsub.f32 %v78, %v243
  %v245 = vand.u32 %v244, 4294901760
  %v246 = vsub.f32 %v244, %v245
  %v247 = vand.u32 %v246, 4294901760
  %248 = vmatmul.mubr.f32.gmra.mrb[0].mxu0 %v247
  %v249 = vpop.f32.mrb[0].mxu0
  %v250 = vadd.f32 0.0, %v249
  %v251 = vpop.f32.mrb[0].mxu0
  %252 = vmatprep.mubr.f32.mxu0 0.0
  %v253 = vand.u32 %v81, 4294901760
  %v254 = vsub.f32 %v81, %v253
  %v255 = vand.u32 %v254, 4294901760
  %v256 = vsub.f32 %v254, %v255
  %v257 = vand.u32 %v256, 4294901760
  %258 = vmatmul.mubr.f32.gmra.mrb[0].mxu0 %v257
  %v259 = vpop.f32.mrb[0].mxu0
  %v260 = vadd.f32 0.0, %v259
  %v261 = vpop.f32.mrb[0].mxu0
  %262 = vmatprep.mubr.f32.mxu0 0.0
  %v263 = vand.u32 %v84, 4294901760
  %v264 = vsub.f32 %v84, %v263
  %v265 = vand.u32 %v264, 4294901760
  %v266 = vsub.f32 %v264, %v265
  %v267 = vand.u32 %v266, 4294901760
  %268 = vmatmul.mubr.f32.gmra.mrb[0].mxu0 %v267
  %v269 = vpop.f32.mrb[0].mxu0
  %v270 = vadd.f32 0.0, %v269
  %v271 = vpop.f32.mrb[0].mxu0
  %272 = vmatprep.mubr.f32.mxu0 0.0
  %v273 = vand.u32 %v87, 4294901760
  %v274 = vsub.f32 %v87, %v273
  %v275 = vand.u32 %v274, 4294901760
  %v276 = vsub.f32 %v274, %v275
  %v277 = vand.u32 %v276, 4294901760
  %278 = vmatmul.mubr.f32.gmra.mrb[0].mxu0 %v277
  %v279 = vpop.f32.mrb[0].mxu0
  %v280 = vadd.f32 0.0, %v279
  %v281 = vpop.f32.mrb[0].mxu0
  %282 = vmatprep.mubr.f32.mxu0 0.0
  %v283 = vand.u32 %v90, 4294901760
  %v284 = vsub.f32 %v90, %v283
  %v285 = vand.u32 %v284, 4294901760
  %v286 = vsub.f32 %v284, %v285
  %v287 = vand.u32 %v286, 4294901760
  %288 = vmatmul.mubr.f32.gmra.mrb[0].mxu0 %v287
  %v289 = vpop.f32.mrb[0].mxu0
  %v290 = vadd.f32 0.0, %v289
  %v291 = vpop.f32.mrb[0].mxu0
  %292 = vmatprep.mubr.f32.mxu0 0.0
  %v293 = vand.u32 %v93, 4294901760
  %v294 = vsub.f32 %v93, %v293
  %v295 = vand.u32 %v294, 4294901760
  %v296 = vsub.f32 %v294, %v295
  %v297 = vand.u32 %v296, 4294901760
  %298 = vmatmul.mubr.f32.gmra.mrb[0].mxu0 %v297
  %v299 = vpop.f32.mrb[0].mxu0
  %v300 = vadd.f32 0.0, %v299
  %v301 = vpop.f32.mrb[0].mxu0
  %302 = vmatprep.mubr.f32.mxu0 0.0
  %v303 = vand.u32 %v96, 4294901760
  %v304 = vsub.f32 %v96, %v303
  %v305 = vand.u32 %v304, 4294901760
  %v306 = vsub.f32 %v304, %v305
  %v307 = vand.u32 %v306, 4294901760
  %308 = vmatmul.mubr.f32.gmra.mrb[0].mxu0 %v307
  %v309 = vpop.f32.mrb[0].mxu0
  %v310 = vadd.f32 0.0, %v309
  %v311 = vpop.f32.mrb[0].mxu0
  %312 = vmatprep.mubr.f32.mxu0 0.0
  %v313 = vand.u32 %v99, 4294901760
  %v314 = vsub.f32 %v99, %v313
  %v315 = vand.u32 %v314, 4294901760
  %v316 = vsub.f32 %v314, %v315
  %v317 = vand.u32 %v316, 4294901760
  %318 = vmatmul.mubr.f32.gmra.mrb[0].mxu0 %v317
  %v319 = vpop.f32.mrb[0].mxu0
  %v320 = vadd.f32 0.0, %v319
  %v321 = vpop.f32.mrb[0].mxu0
  %322 = vmatprep.mubr.f32.mxu0 0.0
  %v323 = vand.u32 %v102, 4294901760
  %v324 = vsub.f32 %v102, %v323
  %v325 = vand.u32 %v324, 4294901760
  %v326 = vsub.f32 %v324, %v325
  %v327 = vand.u32 %v326, 4294901760
  %328 = vmatmul.mubr.f32.gmra.mrb[0].mxu0 %v327
  %v329 = vpop.f32.mrb[0].mxu0
  %v330 = vadd.f32 0.0, %v329
  %v331 = vpop.f32.mrb[0].mxu0
  %332 = vmatprep.mubr.f32.mxu0 0.0
  %v333 = vand.u32 %v105, 4294901760
  %v334 = vsub.f32 %v105, %v333
  %v335 = vand.u32 %v334, 4294901760
  %v336 = vsub.f32 %v334, %v335
  %v337 = vand.u32 %v336, 4294901760
  %338 = vmatmul.mubr.f32.gmra.mrb[0].mxu0 %v337
  %v339 = vpop.f32.mrb[0].mxu0
  %v340 = vadd.f32 0.0, %v339
  %v341 = vpop.f32.mrb[0].mxu0
  %342 = vmatprep.mubr.f32.mxu0 0.0
  %v343 = vand.u32 %v108, 4294901760
  %v344 = vsub.f32 %v108, %v343
  %v345 = vand.u32 %v344, 4294901760
  %v346 = vsub.f32 %v344, %v345
  %v347 = vand.u32 %v346, 4294901760
  %348 = vmatmul.mubr.f32.gmra.mrb[0].mxu0 %v347
  %v349 = vpop.f32.mrb[0].mxu0
  %v350 = vadd.f32 0.0, %v349
  %v351 = vpop.f32.mrb[0].mxu0
  %352 = vmatprep.mubr.f32.mxu0 0.0
  %v353 = vand.u32 %v111, 4294901760
  %v354 = vsub.f32 %v111, %v353
  %v355 = vand.u32 %v354, 4294901760
  %v356 = vsub.f32 %v354, %v355
  %v357 = vand.u32 %v356, 4294901760
  %358 = vmatmul.mubr.f32.gmra.mrb[0].mxu0 %v357
  %v359 = vpop.f32.mrb[0].mxu0
  %v360 = vadd.f32 0.0, %v359
  %v361 = vpop.f32.mrb[0].mxu0
  %362 = vmatprep.mubr.f32.mxu0 0.0
  %v363 = vand.u32 %v114, 4294901760
  %v364 = vsub.f32 %v114, %v363
  %v365 = vand.u32 %v364, 4294901760
  %v366 = vsub.f32 %v364, %v365
  %v367 = vand.u32 %v366, 4294901760
  %368 = vmatmul.mubr.f32.gmra.mrb[0].mxu0 %v367
  %v369 = vpop.f32.mrb[0].mxu0
  %v370 = vadd.f32 0.0, %v369
  %v371 = vpop.f32.mrb[0].mxu0
  %372 = vmatprep.mubr.f32.mxu0 0.0
  %v373 = vand.u32 %v117, 4294901760
  %v374 = vsub.f32 %v117, %v373
  %v375 = vand.u32 %v374, 4294901760
  %v376 = vsub.f32 %v374, %v375
  %v377 = vand.u32 %v376, 4294901760
  %378 = vmatmul.mubr.f32.gmra.mrb[0].mxu0 %v377
  %v379 = vpop.f32.mrb[0].mxu0
  %v380 = vadd.f32 0.0, %v379
  %v381 = vpop.f32.mrb[0].mxu0
  %382 = vmatprep.mubr.f32.mxu0 0.0
  %v383 = vand.u32 %v120, 4294901760
  %v384 = vsub.f32 %v120, %v383
  %v385 = vand.u32 %v384, 4294901760
  %v386 = vsub.f32 %v384, %v385
  %v387 = vand.u32 %v386, 4294901760
  %388 = vmatmul.mubr.f32.gmra.mrb[0].mxu0 %v387
  %v389 = vpop.f32.mrb[0].mxu0
  %v390 = vadd.f32 0.0, %v389
  %v391 = vpop.f32.mrb[0].mxu0
  %392 = vmatprep.mubr.f32.mxu0 0.0
  %v393 = vand.u32 %v123, 4294901760
  %v394 = vsub.f32 %v123, %v393
  %v395 = vand.u32 %v394, 4294901760
  %v396 = vsub.f32 %v394, %v395
  %v397 = vand.u32 %v396, 4294901760
  %398 = vmatmul.mubr.f32.gmra.mrb[0].mxu0 %v397
  %v399 = vpop.f32.mrb[0].mxu0
  %v400 = vadd.f32 0.0, %v399
  %v401 = vpop.f32.mrb[0].mxu0
  %402 = vmatprep.mubr.f32.mxu0 0.0
  %v403 = vand.u32 %v126, 4294901760
  %v404 = vsub.f32 %v126, %v403
  %v405 = vand.u32 %v404, 4294901760
  %v406 = vsub.f32 %v404, %v405
  %v407 = vand.u32 %v406, 4294901760
  %408 = vmatmul.mubr.f32.gmra.mrb[0].mxu0 %v407
  %v409 = vpop.f32.mrb[0].mxu0
  %v410 = vadd.f32 0.0, %v409
  %v411 = vpop.f32.mrb[0].mxu0
  %412 = vmatprep.mubr.f32.mxu0 0.0
  %v413 = vand.u32 %v129, 4294901760
  %v414 = vsub.f32 %v129, %v413
  %v415 = vand.u32 %v414, 4294901760
  %v416 = vsub.f32 %v414, %v415
  %v417 = vand.u32 %v416, 4294901760
  %418 = vmatmul.mubr.f32.gmra.mrb[0].mxu0 %v417
  %v419 = vpop.f32.mrb[0].mxu0
  %v420 = vadd.f32 0.0, %v419
  %v421 = vpop.f32.mrb[0].mxu0
  %422 = vmatprep.mubr.f32.mxu0 0.0
  %v423 = vand.u32 %v132, 4294901760
  %v424 = vsub.f32 %v132, %v423
  %v425 = vand.u32 %v424, 4294901760
  %v426 = vsub.f32 %v424, %v425
  %v427 = vand.u32 %v426, 4294901760
  %428 = vmatmul.mubr.f32.gmra.mrb[0].mxu0 %v427
  %v429 = vpop.f32.mrb[0].mxu0
  %v430 = vadd.f32 0.0, %v429
  %v431 = vpop.f32.mrb[0].mxu0
  %432 = vmatprep.mubr.f32.mxu0 0.0
  %v433 = vand.u32 %v135, 4294901760
  %v434 = vsub.f32 %v135, %v433
  %v435 = vand.u32 %v434, 4294901760
  %v436 = vsub.f32 %v434, %v435
  %v437 = vand.u32 %v436, 4294901760
  %438 = vmatmul.mubr.f32.gmra.mrb[0].mxu0 %v437
  %v439 = vpop.f32.mrb[0].mxu0
  %v440 = vadd.f32 0.0, %v439
  %v441 = vpop.f32.mrb[0].mxu0
  %442 = vmatprep.mubr.f32.mxu0 0.0
  %v443 = vand.u32 %v138, 4294901760
  %v444 = vsub.f32 %v138, %v443
  %v445 = vand.u32 %v444, 4294901760
  %v446 = vsub.f32 %v444, %v445
  %v447 = vand.u32 %v446, 4294901760
  %448 = vmatmul.mubr.f32.gmra.mrb[0].mxu0 %v447
  %v449 = vpop.f32.mrb[0].mxu0
  %v450 = vadd.f32 0.0, %v449
  %v451 = vpop.f32.mrb[0].mxu0
  %452 = vdwg.mxu0
  %453 = vmatprep.subr.mxu0 0.0
  %v454 = vand.u32 %v35, 4294901760
  %v455 = vsub.f32 %v35, %v454
  %v456 = vand.u32 %v455, 4294901760
  %v457 = vsub.f32 %v455, %v456
  %v458 = vand.u32 %v457, 4294901760
  %459 = vmatpush1.msra.mxu0 %v458
  %460 = vmatprep.subr.mxu0 0.0
  %v461 = vand.u32 %v36, 4294901760
  %v462 = vsub.f32 %v36, %v461
  %v463 = vand.u32 %v462, 4294901760
  %v464 = vsub.f32 %v462, %v463
  %v465 = vand.u32 %v464, 4294901760
  %466 = vmatpush1.msra.mxu0 %v465
  %467 = vmatprep.subr.mxu0 0.0
  %v468 = vand.u32 %v37, 4294901760
  %v469 = vsub.f32 %v37, %v468
  %v470 = vand.u32 %v469, 4294901760
  %v471 = vsub.f32 %v469, %v470
  %v472 = vand.u32 %v471, 4294901760
  %473 = vmatpush1.msra.mxu0 %v472
  %474 = vmatprep.subr.mxu0 0.0
  %v475 = vand.u32 %v38, 4294901760
  %v476 = vsub.f32 %v38, %v475
  %v477 = vand.u32 %v476, 4294901760
  %v478 = vsub.f32 %v476, %v477
  %v479 = vand.u32 %v478, 4294901760
  %480 = vmatpush1.msra.mxu0 %v479
  %481 = vmatprep.subr.mxu0 0.0
  %v482 = vand.u32 %v39, 4294901760
  %v483 = vsub.f32 %v39, %v482
  %v484 = vand.u32 %v483, 4294901760
  %v485 = vsub.f32 %v483, %v484
  %v486 = vand.u32 %v485, 4294901760
  %487 = vmatpush1.msra.mxu0 %v486
  %488 = vmatprep.subr.mxu0 0.0
  %v489 = vand.u32 %v40, 4294901760
  %v490 = vsub.f32 %v40, %v489
  %v491 = vand.u32 %v490, 4294901760
  %v492 = vsub.f32 %v490, %v491
  %v493 = vand.u32 %v492, 4294901760
  %494 = vmatpush1.msra.mxu0 %v493
  %495 = vmatprep.subr.mxu0 0.0
  %v496 = vand.u32 %v41, 4294901760
  %v497 = vsub.f32 %v41, %v496
  %v498 = vand.u32 %v497, 4294901760
  %v499 = vsub.f32 %v497, %v498
  %v500 = vand.u32 %v499, 4294901760
  %501 = vmatpush1.msra.mxu0 %v500
  %502 = vmatprep.subr.mxu0 0.0
  %v503 = vand.u32 %v42, 4294901760
  %v504 = vsub.f32 %v42, %v503
  %v505 = vand.u32 %v504, 4294901760
  %v506 = vsub.f32 %v504, %v505
  %v507 = vand.u32 %v506, 4294901760
  %508 = vmatpush1.msra.mxu0 %v507
  %509 = vmatprep.subr.mxu0 0.0
  %510 = vmatpush1.msra.mxu0 0.0
  %511 = vmatprep.subr.mxu0 0.0
  %512 = vmatpush1.msra.mxu0 0.0
  %513 = vmatprep.subr.mxu0 0.0
  %514 = vmatpush1.msra.mxu0 0.0
  %515 = vmatprep.subr.mxu0 0.0
  %516 = vmatpush1.msra.mxu0 0.0
  %517 = vmatprep.subr.mxu0 0.0
  %518 = vmatpush1.msra.mxu0 0.0
  %519 = vmatprep.subr.mxu0 0.0
  %520 = vmatpush1.msra.mxu0 0.0
  %521 = vmatprep.subr.mxu0 0.0
  %522 = vmatpush1.msra.mxu0 0.0
  %523 = vmatprep.subr.mxu0 0.0
  %524 = vmatpush1.msra.mxu0 0.0
  %525 = vmatprep.subr.mxu0 0.0
  %526 = vmatpush1.msra.mxu0 0.0
  %527 = vmatprep.subr.mxu0 0.0
  %528 = vmatpush1.msra.mxu0 0.0
  %529 = vmatprep.subr.mxu0 0.0
  %530 = vmatpush1.msra.mxu0 0.0
  %531 = vmatprep.subr.mxu0 0.0
  %532 = vmatpush1.msra.mxu0 0.0
  %533 = vmatprep.subr.mxu0 0.0
  %534 = vmatpush1.msra.mxu0 0.0
  %535 = vmatprep.subr.mxu0 0.0
  %536 = vmatpush1.msra.mxu0 0.0
  %537 = vmatprep.subr.mxu0 0.0
  %538 = vmatpush1.msra.mxu0 0.0
  %539 = vmatprep.subr.mxu0 0.0
  %540 = vmatpush1.msra.mxu0 0.0
  %541 = vmatprep.subr.mxu0 0.0
  %542 = vmatpush1.msra.mxu0 0.0
  %543 = vmatprep.subr.mxu0 0.0
  %544 = vmatpush1.msra.mxu0 0.0
  %545 = vmatprep.subr.mxu0 0.0
  %546 = vmatpush1.msra.mxu0 0.0
  %547 = vmatprep.subr.mxu0 0.0
  %548 = vmatpush1.msra.mxu0 0.0
  %549 = vmatprep.subr.mxu0 0.0
  %550 = vmatpush1.msra.mxu0 0.0
  %551 = vmatprep.subr.mxu0 0.0
  %552 = vmatpush1.msra.mxu0 0.0
  %553 = vmatprep.subr.mxu0 0.0
  %554 = vmatpush1.msra.mxu0 0.0
  %555 = vmatprep.subr.mxu0 0.0
  %556 = vmatpush1.msra.mxu0 0.0
  %557 = vmatprep.mubr.f32.mxu0 0.0
  %v558 = vand.u32 %v69, 4294901760
  %559 = vmatmul.mubr.f32.gmra.mrb[0].mxu0 %v558
  %v560 = vpop.f32.mrb[0].mxu0
  %v561 = vadd.f32 %v220, %v560
  %v562 = vpop.f32.mrb[0].mxu0
  %563 = vmatprep.mubr.f32.mxu0 0.0
  %v564 = vand.u32 %v72, 4294901760
  %565 = vmatmul.mubr.f32.gmra.mrb[0].mxu0 %v564
  %v566 = vpop.f32.mrb[0].mxu0
  %v567 = vadd.f32 %v230, %v566
  %v568 = vpop.f32.mrb[0].mxu0
  %569 = vmatprep.mubr.f32.mxu0 0.0
  %v570 = vand.u32 %v75, 4294901760
  %571 = vmatmul.mubr.f32.gmra.mrb[0].mxu0 %v570
  %v572 = vpop.f32.mrb[0].mxu0
  %v573 = vadd.f32 %v240, %v572
  %v574 = vpop.f32.mrb[0].mxu0
  %575 = vmatprep.mubr.f32.mxu0 0.0
  %v576 = vand.u32 %v78, 4294901760
  %577 = vmatmul.mubr.f32.gmra.mrb[0].mxu0 %v576
  %v578 = vpop.f32.mrb[0].mxu0
  %v579 = vadd.f32 %v250, %v578
  %v580 = vpop.f32.mrb[0].mxu0
  %581 = vmatprep.mubr.f32.mxu0 0.0
  %v582 = vand.u32 %v81, 4294901760
  %583 = vmatmul.mubr.f32.gmra.mrb[0].mxu0 %v582
  %v584 = vpop.f32.mrb[0].mxu0
  %v585 = vadd.f32 %v260, %v584
  %v586 = vpop.f32.mrb[0].mxu0
  %587 = vmatprep.mubr.f32.mxu0 0.0
  %v588 = vand.u32 %v84, 4294901760
  %589 = vmatmul.mubr.f32.gmra.mrb[0].mxu0 %v588
  %v590 = vpop.f32.mrb[0].mxu0
  %v591 = vadd.f32 %v270, %v590
  %v592 = vpop.f32.mrb[0].mxu0
  %593 = vmatprep.mubr.f32.mxu0 0.0
  %v594 = vand.u32 %v87, 4294901760
  %595 = vmatmul.mubr.f32.gmra.mrb[0].mxu0 %v594
  %v596 = vpop.f32.mrb[0].mxu0
  %v597 = vadd.f32 %v280, %v596
  %v598 = vpop.f32.mrb[0].mxu0
  %599 = vmatprep.mubr.f32.mxu0 0.0
  %v600 = vand.u32 %v90, 4294901760
  %601 = vmatmul.mubr.f32.gmra.mrb[0].mxu0 %v600
  %v602 = vpop.f32.mrb[0].mxu0
  %v603 = vadd.f32 %v290, %v602
  %v604 = vpop.f32.mrb[0].mxu0
  %605 = vmatprep.mubr.f32.mxu0 0.0
  %v606 = vand.u32 %v93, 4294901760
  %607 = vmatmul.mubr.f32.gmra.mrb[0].mxu0 %v606
  %v608 = vpop.f32.mrb[0].mxu0
  %v609 = vadd.f32 %v300, %v608
  %v610 = vpop.f32.mrb[0].mxu0
  %611 = vmatprep.mubr.f32.mxu0 0.0
  %v612 = vand.u32 %v96, 4294901760
  %613 = vmatmul.mubr.f32.gmra.mrb[0].mxu0 %v612
  %v614 = vpop.f32.mrb[0].mxu0
  %v615 = vadd.f32 %v310, %v614
  %v616 = vpop.f32.mrb[0].mxu0
  %617 = vmatprep.mubr.f32.mxu0 0.0
  %v618 = vand.u32 %v99, 4294901760
  %619 = vmatmul.mubr.f32.gmra.mrb[0].mxu0 %v618
  %v620 = vpop.f32.mrb[0].mxu0
  %v621 = vadd.f32 %v320, %v620
  %v622 = vpop.f32.mrb[0].mxu0
  %623 = vmatprep.mubr.f32.mxu0 0.0
  %v624 = vand.u32 %v102, 4294901760
  %625 = vmatmul.mubr.f32.gmra.mrb[0].mxu0 %v624
  %v626 = vpop.f32.mrb[0].mxu0
  %v627 = vadd.f32 %v330, %v626
  %v628 = vpop.f32.mrb[0].mxu0
  %629 = vmatprep.mubr.f32.mxu0 0.0
  %v630 = vand.u32 %v105, 4294901760
  %631 = vmatmul.mubr.f32.gmra.mrb[0].mxu0 %v630
  %v632 = vpop.f32.mrb[0].mxu0
  %v633 = vadd.f32 %v340, %v632
  %v634 = vpop.f32.mrb[0].mxu0
  %635 = vmatprep.mubr.f32.mxu0 0.0
  %v636 = vand.u32 %v108, 4294901760
  %637 = vmatmul.mubr.f32.gmra.mrb[0].mxu0 %v636
  %v638 = vpop.f32.mrb[0].mxu0
  %v639 = vadd.f32 %v350, %v638
  %v640 = vpop.f32.mrb[0].mxu0
  %641 = vmatprep.mubr.f32.mxu0 0.0
  %v642 = vand.u32 %v111, 4294901760
  %643 = vmatmul.mubr.f32.gmra.mrb[0].mxu0 %v642
  %v644 = vpop.f32.mrb[0].mxu0
  %v645 = vadd.f32 %v360, %v644
  %v646 = vpop.f32.mrb[0].mxu0
  %647 = vmatprep.mubr.f32.mxu0 0.0
  %v648 = vand.u32 %v114, 4294901760
  %649 = vmatmul.mubr.f32.gmra.mrb[0].mxu0 %v648
  %v650 = vpop.f32.mrb[0].mxu0
  %v651 = vadd.f32 %v370, %v650
  %v652 = vpop.f32.mrb[0].mxu0
  %653 = vmatprep.mubr.f32.mxu0 0.0
  %v654 = vand.u32 %v117, 4294901760
  %655 = vmatmul.mubr.f32.gmra.mrb[0].mxu0 %v654
  %v656 = vpop.f32.mrb[0].mxu0
  %v657 = vadd.f32 %v380, %v656
  %v658 = vpop.f32.mrb[0].mxu0
  %659 = vmatprep.mubr.f32.mxu0 0.0
  %v660 = vand.u32 %v120, 4294901760
  %661 = vmatmul.mubr.f32.gmra.mrb[0].mxu0 %v660
  %v662 = vpop.f32.mrb[0].mxu0
  %v663 = vadd.f32 %v390, %v662
  %v664 = vpop.f32.mrb[0].mxu0
  %665 = vmatprep.mubr.f32.mxu0 0.0
  %v666 = vand.u32 %v123, 4294901760
  %667 = vmatmul.mubr.f32.gmra.mrb[0].mxu0 %v666
  %v668 = vpop.f32.mrb[0].mxu0
  %v669 = vadd.f32 %v400, %v668
  %v670 = vpop.f32.mrb[0].mxu0
  %671 = vmatprep.mubr.f32.mxu0 0.0
  %v672 = vand.u32 %v126, 4294901760
  %673 = vmatmul.mubr.f32.gmra.mrb[0].mxu0 %v672
  %v674 = vpop.f32.mrb[0].mxu0
  %v675 = vadd.f32 %v410, %v674
  %v676 = vpop.f32.mrb[0].mxu0
  %677 = vmatprep.mubr.f32.mxu0 0.0
  %v678 = vand.u32 %v129, 4294901760
  %679 = vmatmul.mubr.f32.gmra.mrb[0].mxu0 %v678
  %v680 = vpop.f32.mrb[0].mxu0
  %v681 = vadd.f32 %v420, %v680
  %v682 = vpop.f32.mrb[0].mxu0
  %683 = vmatprep.mubr.f32.mxu0 0.0
  %v684 = vand.u32 %v132, 4294901760
  %685 = vmatmul.mubr.f32.gmra.mrb[0].mxu0 %v684
  %v686 = vpop.f32.mrb[0].mxu0
  %v687 = vadd.f32 %v430, %v686
  %v688 = vpop.f32.mrb[0].mxu0
  %689 = vmatprep.mubr.f32.mxu0 0.0
  %v690 = vand.u32 %v135, 4294901760
  %691 = vmatmul.mubr.f32.gmra.mrb[0].mxu0 %v690
  %v692 = vpop.f32.mrb[0].mxu0
  %v693 = vadd.f32 %v440, %v692
  %v694 = vpop.f32.mrb[0].mxu0
  %695 = vmatprep.mubr.f32.mxu0 0.0
  %v696 = vand.u32 %v138, 4294901760
  %697 = vmatmul.mubr.f32.gmra.mrb[0].mxu0 %v696
  %v698 = vpop.f32.mrb[0].mxu0
  %v699 = vadd.f32 %v450, %v698
  %v700 = vpop.f32.mrb[0].mxu0
  %701 = vdwg.mxu0
  %702 = vmatprep.subr.mxu0 0.0
  %v703 = vand.u32 %v35, 4294901760
  %v704 = vsub.f32 %v35, %v703
  %705 = vmatpush1.msra.mxu0 %v704
  %706 = vmatprep.subr.mxu0 0.0
  %v707 = vand.u32 %v36, 4294901760
  %v708 = vsub.f32 %v36, %v707
  %709 = vmatpush1.msra.mxu0 %v708
  %710 = vmatprep.subr.mxu0 0.0
  %v711 = vand.u32 %v37, 4294901760
  %v712 = vsub.f32 %v37, %v711
  %713 = vmatpush1.msra.mxu0 %v712
  %714 = vmatprep.subr.mxu0 0.0
  %v715 = vand.u32 %v38, 4294901760
  %v716 = vsub.f32 %v38, %v715
  %717 = vmatpush1.msra.mxu0 %v716
  %718 = vmatprep.subr.mxu0 0.0
  %v719 = vand.u32 %v39, 4294901760
  %v720 = vsub.f32 %v39, %v719
  %721 = vmatpush1.msra.mxu0 %v720
  %722 = vmatprep.subr.mxu0 0.0
  %v723 = vand.u32 %v40, 4294901760
  %v724 = vsub.f32 %v40, %v723
  %725 = vmatpush1.msra.mxu0 %v724
  %726 = vmatprep.subr.mxu0 0.0
  %v727 = vand.u32 %v41, 4294901760
  %v728 = vsub.f32 %v41, %v727
  %729 = vmatpush1.msra.mxu0 %v728
  %730 = vmatprep.subr.mxu0 0.0
  %v731 = vand.u32 %v42, 4294901760
  %v732 = vsub.f32 %v42, %v731
  %733 = vmatpush1.msra.mxu0 %v732
  %734 = vmatprep.subr.mxu0 0.0
  %735 = vmatpush1.msra.mxu0 0.0
  %736 = vmatprep.subr.mxu0 0.0
  %737 = vmatpush1.msra.mxu0 0.0
  %738 = vmatprep.subr.mxu0 0.0
  %739 = vmatpush1.msra.mxu0 0.0
  %740 = vmatprep.subr.mxu0 0.0
  %741 = vmatpush1.msra.mxu0 0.0
  %742 = vmatprep.subr.mxu0 0.0
  %743 = vmatpush1.msra.mxu0 0.0
  %744 = vmatprep.subr.mxu0 0.0
  %745 = vmatpush1.msra.mxu0 0.0
  %746 = vmatprep.subr.mxu0 0.0
  %747 = vmatpush1.msra.mxu0 0.0
  %748 = vmatprep.subr.mxu0 0.0
  %749 = vmatpush1.msra.mxu0 0.0
  %750 = vmatprep.subr.mxu0 0.0
  %751 = vmatpush1.msra.mxu0 0.0
  %752 = vmatprep.subr.mxu0 0.0
  %753 = vmatpush1.msra.mxu0 0.0
  %754 = vmatprep.subr.mxu0 0.0
  %755 = vmatpush1.msra.mxu0 0.0
  %756 = vmatprep.subr.mxu0 0.0
  %757 = vmatpush1.msra.mxu0 0.0
  %758 = vmatprep.subr.mxu0 0.0
  %759 = vmatpush1.msra.mxu0 0.0
  %760 = vmatprep.subr.mxu0 0.0
  %761 = vmatpush1.msra.mxu0 0.0
  %762 = vmatprep.subr.mxu0 0.0
  %763 = vmatpush1.msra.mxu0 0.0
  %764 = vmatprep.subr.mxu0 0.0
  %765 = vmatpush1.msra.mxu0 0.0
  %766 = vmatprep.subr.mxu0 0.0
  %767 = vmatpush1.msra.mxu0 0.0
  %768 = vmatprep.subr.mxu0 0.0
  %769 = vmatpush1.msra.mxu0 0.0
  %770 = vmatprep.subr.mxu0 0.0
  %771 = vmatpush1.msra.mxu0 0.0
  %772 = vmatprep.subr.mxu0 0.0
  %773 = vmatpush1.msra.mxu0 0.0
  %774 = vmatprep.subr.mxu0 0.0
  %775 = vmatpush1.msra.mxu0 0.0
  %776 = vmatprep.subr.mxu0 0.0
  %777 = vmatpush1.msra.mxu0 0.0
  %778 = vmatprep.subr.mxu0 0.0
  %779 = vmatpush1.msra.mxu0 0.0
  %780 = vmatprep.subr.mxu0 0.0
  %781 = vmatpush1.msra.mxu0 0.0
  %782 = vmatprep.mubr.f32.mxu0 0.0
  %v783 = vand.u32 %v69, 4294901760
  %v784 = vsub.f32 %v69, %v783
  %785 = vmatmul.mubr.f32.gmra.mrb[0].mxu0 %v784
  %v786 = vpop.f32.mrb[0].mxu0
  %v787 = vadd.f32 %v561, %v786
  %v788 = vpop.f32.mrb[0].mxu0
  %789 = vmatprep.mubr.f32.mxu0 0.0
  %v790 = vand.u32 %v72, 4294901760
  %v791 = vsub.f32 %v72, %v790
  %792 = vmatmul.mubr.f32.gmra.mrb[0].mxu0 %v791
  %v793 = vpop.f32.mrb[0].mxu0
  %v794 = vadd.f32 %v567, %v793
  %v795 = vpop.f32.mrb[0].mxu0
  %796 = vmatprep.mubr.f32.mxu0 0.0
  %v797 = vand.u32 %v75, 4294901760
  %v798 = vsub.f32 %v75, %v797
  %799 = vmatmul.mubr.f32.gmra.mrb[0].mxu0 %v798
  %v800 = vpop.f32.mrb[0].mxu0
  %v801 = vadd.f32 %v573, %v800
  %v802 = vpop.f32.mrb[0].mxu0
  %803 = vmatprep.mubr.f32.mxu0 0.0
  %v804 = vand.u32 %v78, 4294901760
  %v805 = vsub.f32 %v78, %v804
  %806 = vmatmul.mubr.f32.gmra.mrb[0].mxu0 %v805
  %v807 = vpop.f32.mrb[0].mxu0
  %v808 = vadd.f32 %v579, %v807
  %v809 = vpop.f32.mrb[0].mxu0
  %810 = vmatprep.mubr.f32.mxu0 0.0
  %v811 = vand.u32 %v81, 4294901760
  %v812 = vsub.f32 %v81, %v811
  %813 = vmatmul.mubr.f32.gmra.mrb[0].mxu0 %v812
  %v814 = vpop.f32.mrb[0].mxu0
  %v815 = vadd.f32 %v585, %v814
  %v816 = vpop.f32.mrb[0].mxu0
  %817 = vmatprep.mubr.f32.mxu0 0.0
  %v818 = vand.u32 %v84, 4294901760
  %v819 = vsub.f32 %v84, %v818
  %820 = vmatmul.mubr.f32.gmra.mrb[0].mxu0 %v819
  %v821 = vpop.f32.mrb[0].mxu0
  %v822 = vadd.f32 %v591, %v821
  %v823 = vpop.f32.mrb[0].mxu0
  %824 = vmatprep.mubr.f32.mxu0 0.0
  %v825 = vand.u32 %v87, 4294901760
  %v826 = vsub.f32 %v87, %v825
  %827 = vmatmul.mubr.f32.gmra.mrb[0].mxu0 %v826
  %v828 = vpop.f32.mrb[0].mxu0
  %v829 = vadd.f32 %v597, %v828
  %v830 = vpop.f32.mrb[0].mxu0
  %831 = vmatprep.mubr.f32.mxu0 0.0
  %v832 = vand.u32 %v90, 4294901760
  %v833 = vsub.f32 %v90, %v832
  %834 = vmatmul.mubr.f32.gmra.mrb[0].mxu0 %v833
  %v835 = vpop.f32.mrb[0].mxu0
  %v836 = vadd.f32 %v603, %v835
  %v837 = vpop.f32.mrb[0].mxu0
  %838 = vmatprep.mubr.f32.mxu0 0.0
  %v839 = vand.u32 %v93, 4294901760
  %v840 = vsub.f32 %v93, %v839
  %841 = vmatmul.mubr.f32.gmra.mrb[0].mxu0 %v840
  %v842 = vpop.f32.mrb[0].mxu0
  %v843 = vadd.f32 %v609, %v842
  %v844 = vpop.f32.mrb[0].mxu0
  %845 = vmatprep.mubr.f32.mxu0 0.0
  %v846 = vand.u32 %v96, 4294901760
  %v847 = vsub.f32 %v96, %v846
  %848 = vmatmul.mubr.f32.gmra.mrb[0].mxu0 %v847
  %v849 = vpop.f32.mrb[0].mxu0
  %v850 = vadd.f32 %v615, %v849
  %v851 = vpop.f32.mrb[0].mxu0
  %852 = vmatprep.mubr.f32.mxu0 0.0
  %v853 = vand.u32 %v99, 4294901760
  %v854 = vsub.f32 %v99, %v853
  %855 = vmatmul.mubr.f32.gmra.mrb[0].mxu0 %v854
  %v856 = vpop.f32.mrb[0].mxu0
  %v857 = vadd.f32 %v621, %v856
  %v858 = vpop.f32.mrb[0].mxu0
  %859 = vmatprep.mubr.f32.mxu0 0.0
  %v860 = vand.u32 %v102, 4294901760
  %v861 = vsub.f32 %v102, %v860
  %862 = vmatmul.mubr.f32.gmra.mrb[0].mxu0 %v861
  %v863 = vpop.f32.mrb[0].mxu0
  %v864 = vadd.f32 %v627, %v863
  %v865 = vpop.f32.mrb[0].mxu0
  %866 = vmatprep.mubr.f32.mxu0 0.0
  %v867 = vand.u32 %v105, 4294901760
  %v868 = vsub.f32 %v105, %v867
  %869 = vmatmul.mubr.f32.gmra.mrb[0].mxu0 %v868
  %v870 = vpop.f32.mrb[0].mxu0
  %v871 = vadd.f32 %v633, %v870
  %v872 = vpop.f32.mrb[0].mxu0
  %873 = vmatprep.mubr.f32.mxu0 0.0
  %v874 = vand.u32 %v108, 4294901760
  %v875 = vsub.f32 %v108, %v874
  %876 = vmatmul.mubr.f32.gmra.mrb[0].mxu0 %v875
  %v877 = vpop.f32.mrb[0].mxu0
  %v878 = vadd.f32 %v639, %v877
  %v879 = vpop.f32.mrb[0].mxu0
  %880 = vmatprep.mubr.f32.mxu0 0.0
  %v881 = vand.u32 %v111, 4294901760
  %v882 = vsub.f32 %v111, %v881
  %883 = vmatmul.mubr.f32.gmra.mrb[0].mxu0 %v882
  %v884 = vpop.f32.mrb[0].mxu0
  %v885 = vadd.f32 %v645, %v884
  %v886 = vpop.f32.mrb[0].mxu0
  %887 = vmatprep.mubr.f32.mxu0 0.0
  %v888 = vand.u32 %v114, 4294901760
  %v889 = vsub.f32 %v114, %v888
  %890 = vmatmul.mubr.f32.gmra.mrb[0].mxu0 %v889
  %v891 = vpop.f32.mrb[0].mxu0
  %v892 = vadd.f32 %v651, %v891
  %v893 = vpop.f32.mrb[0].mxu0
  %894 = vmatprep.mubr.f32.mxu0 0.0
  %v895 = vand.u32 %v117, 4294901760
  %v896 = vsub.f32 %v117, %v895
  %897 = vmatmul.mubr.f32.gmra.mrb[0].mxu0 %v896
  %v898 = vpop.f32.mrb[0].mxu0
  %v899 = vadd.f32 %v657, %v898
  %v900 = vpop.f32.mrb[0].mxu0
  %901 = vmatprep.mubr.f32.mxu0 0.0
  %v902 = vand.u32 %v120, 4294901760
  %v903 = vsub.f32 %v120, %v902
  %904 = vmatmul.mubr.f32.gmra.mrb[0].mxu0 %v903
  %v905 = vpop.f32.mrb[0].mxu0
  %v906 = vadd.f32 %v663, %v905
  %v907 = vpop.f32.mrb[0].mxu0
  %908 = vmatprep.mubr.f32.mxu0 0.0
  %v909 = vand.u32 %v123, 4294901760
  %v910 = vsub.f32 %v123, %v909
  %911 = vmatmul.mubr.f32.gmra.mrb[0].mxu0 %v910
  %v912 = vpop.f32.mrb[0].mxu0
  %v913 = vadd.f32 %v669, %v912
  %v914 = vpop.f32.mrb[0].mxu0
  %915 = vmatprep.mubr.f32.mxu0 0.0
  %v916 = vand.u32 %v126, 4294901760
  %v917 = vsub.f32 %v126, %v916
  %918 = vmatmul.mubr.f32.gmra.mrb[0].mxu0 %v917
  %v919 = vpop.f32.mrb[0].mxu0
  %v920 = vadd.f32 %v675, %v919
  %v921 = vpop.f32.mrb[0].mxu0
  %922 = vmatprep.mubr.f32.mxu0 0.0
  %v923 = vand.u32 %v129, 4294901760
  %v924 = vsub.f32 %v129, %v923
  %925 = vmatmul.mubr.f32.gmra.mrb[0].mxu0 %v924
  %v926 = vpop.f32.mrb[0].mxu0
  %v927 = vadd.f32 %v681, %v926
  %v928 = vpop.f32.mrb[0].mxu0
  %929 = vmatprep.mubr.f32.mxu0 0.0
  %v930 = vand.u32 %v132, 4294901760
  %v931 = vsub.f32 %v132, %v930
  %932 = vmatmul.mubr.f32.gmra.mrb[0].mxu0 %v931
  %v933 = vpop.f32.mrb[0].mxu0
  %v934 = vadd.f32 %v687, %v933
  %v935 = vpop.f32.mrb[0].mxu0
  %936 = vmatprep.mubr.f32.mxu0 0.0
  %v937 = vand.u32 %v135, 4294901760
  %v938 = vsub.f32 %v135, %v937
  %939 = vmatmul.mubr.f32.gmra.mrb[0].mxu0 %v938
  %v940 = vpop.f32.mrb[0].mxu0
  %v941 = vadd.f32 %v693, %v940
  %v942 = vpop.f32.mrb[0].mxu0
  %943 = vmatprep.mubr.f32.mxu0 0.0
  %v944 = vand.u32 %v138, 4294901760
  %v945 = vsub.f32 %v138, %v944
  %946 = vmatmul.mubr.f32.gmra.mrb[0].mxu0 %v945
  %v947 = vpop.f32.mrb[0].mxu0
  %v948 = vadd.f32 %v699, %v947
  %v949 = vpop.f32.mrb[0].mxu0
  %950 = vdwg.mxu0
  %951 = vmatprep.subr.mxu0 0.0
  %v952 = vand.u32 %v35, 4294901760
  %953 = vmatpush1.msra.mxu0 %v952
  %954 = vmatprep.subr.mxu0 0.0
  %v955 = vand.u32 %v36, 4294901760
  %956 = vmatpush1.msra.mxu0 %v955
  %957 = vmatprep.subr.mxu0 0.0
  %v958 = vand.u32 %v37, 4294901760
  %959 = vmatpush1.msra.mxu0 %v958
  %960 = vmatprep.subr.mxu0 0.0
  %v961 = vand.u32 %v38, 4294901760
  %962 = vmatpush1.msra.mxu0 %v961
  %963 = vmatprep.subr.mxu0 0.0
  %v964 = vand.u32 %v39, 4294901760
  %965 = vmatpush1.msra.mxu0 %v964
  %966 = vmatprep.subr.mxu0 0.0
  %v967 = vand.u32 %v40, 4294901760
  %968 = vmatpush1.msra.mxu0 %v967
  %969 = vmatprep.subr.mxu0 0.0
  %v970 = vand.u32 %v41, 4294901760
  %971 = vmatpush1.msra.mxu0 %v970
  %972 = vmatprep.subr.mxu0 0.0
  %v973 = vand.u32 %v42, 4294901760
  %974 = vmatpush1.msra.mxu0 %v973
  %975 = vmatprep.subr.mxu0 0.0
  %976 = vmatpush1.msra.mxu0 0.0
  %977 = vmatprep.subr.mxu0 0.0
  %978 = vmatpush1.msra.mxu0 0.0
  %979 = vmatprep.subr.mxu0 0.0
  %980 = vmatpush1.msra.mxu0 0.0
  %981 = vmatprep.subr.mxu0 0.0
  %982 = vmatpush1.msra.mxu0 0.0
  %983 = vmatprep.subr.mxu0 0.0
  %984 = vmatpush1.msra.mxu0 0.0
  %985 = vmatprep.subr.mxu0 0.0
  %986 = vmatpush1.msra.mxu0 0.0
  %987 = vmatprep.subr.mxu0 0.0
  %988 = vmatpush1.msra.mxu0 0.0
  %989 = vmatprep.subr.mxu0 0.0
  %990 = vmatpush1.msra.mxu0 0.0
  %991 = vmatprep.subr.mxu0 0.0
  %992 = vmatpush1.msra.mxu0 0.0
  %993 = vmatprep.subr.mxu0 0.0
  %994 = vmatpush1.msra.mxu0 0.0
  %995 = vmatprep.subr.mxu0 0.0
  %996 = vmatpush1.msra.mxu0 0.0
  %997 = vmatprep.subr.mxu0 0.0
  %998 = vmatpush1.msra.mxu0 0.0
  %999 = vmatprep.subr.mxu0 0.0
  %1000 = vmatpush1.msra.mxu0 0.0
  %1001 = vmatprep.subr.mxu0 0.0
  %1002 = vmatpush1.msra.mxu0 0.0
  %1003 = vmatprep.subr.mxu0 0.0
  %1004 = vmatpush1.msra.mxu0 0.0
  %1005 = vmatprep.subr.mxu0 0.0
  %1006 = vmatpush1.msra.mxu0 0.0
  %1007 = vmatprep.subr.mxu0 0.0
  %1008 = vmatpush1.msra.mxu0 0.0
  %1009 = vmatprep.subr.mxu0 0.0
  %1010 = vmatpush1.msra.mxu0 0.0
  %1011 = vmatprep.subr.mxu0 0.0
  %1012 = vmatpush1.msra.mxu0 0.0
  %1013 = vmatprep.subr.mxu0 0.0
  %1014 = vmatpush1.msra.mxu0 0.0
  %1015 = vmatprep.subr.mxu0 0.0
  %1016 = vmatpush1.msra.mxu0 0.0
  %1017 = vmatprep.subr.mxu0 0.0
  %1018 = vmatpush1.msra.mxu0 0.0
  %1019 = vmatprep.subr.mxu0 0.0
  %1020 = vmatpush1.msra.mxu0 0.0
  %1021 = vmatprep.subr.mxu0 0.0
  %1022 = vmatpush1.msra.mxu0 0.0
  %1023 = vmatprep.mubr.f32.mxu0 0.0
  %v1024 = vand.u32 %v69, 4294901760
  %v1025 = vsub.f32 %v69, %v1024
  %v1026 = vand.u32 %v1025, 4294901760
  %1027 = vmatmul.mubr.f32.gmra.mrb[0].mxu0 %v1026
  %v1028 = vpop.f32.mrb[0].mxu0
  %v1029 = vadd.f32 %v787, %v1028
  %v1030 = vpop.f32.mrb[0].mxu0
  %1031 = vmatprep.mubr.f32.mxu0 0.0
  %v1032 = vand.u32 %v72, 4294901760
  %v1033 = vsub.f32 %v72, %v1032
  %v1034 = vand.u32 %v1033, 4294901760
  %1035 = vmatmul.mubr.f32.gmra.mrb[0].mxu0 %v1034
  %v1036 = vpop.f32.mrb[0].mxu0
  %v1037 = vadd.f32 %v794, %v1036
  %v1038 = vpop.f32.mrb[0].mxu0
  %1039 = vmatprep.mubr.f32.mxu0 0.0
  %v1040 = vand.u32 %v75, 4294901760
  %v1041 = vsub.f32 %v75, %v1040
  %v1042 = vand.u32 %v1041, 4294901760
  %1043 = vmatmul.mubr.f32.gmra.mrb[0].mxu0 %v1042
  %v1044 = vpop.f32.mrb[0].mxu0
  %v1045 = vadd.f32 %v801, %v1044
  %v1046 = vpop.f32.mrb[0].mxu0
  %1047 = vmatprep.mubr.f32.mxu0 0.0
  %v1048 = vand.u32 %v78, 4294901760
  %v1049 = vsub.f32 %v78, %v1048
  %v1050 = vand.u32 %v1049, 4294901760
  %1051 = vmatmul.mubr.f32.gmra.mrb[0].mxu0 %v1050
  %v1052 = vpop.f32.mrb[0].mxu0
  %v1053 = vadd.f32 %v808, %v1052
  %v1054 = vpop.f32.mrb[0].mxu0
  %1055 = vmatprep.mubr.f32.mxu0 0.0
  %v1056 = vand.u32 %v81, 4294901760
  %v1057 = vsub.f32 %v81, %v1056
  %v1058 = vand.u32 %v1057, 4294901760
  %1059 = vmatmul.mubr.f32.gmra.mrb[0].mxu0 %v1058
  %v1060 = vpop.f32.mrb[0].mxu0
  %v1061 = vadd.f32 %v815, %v1060
  %v1062 = vpop.f32.mrb[0].mxu0
  %1063 = vmatprep.mubr.f32.mxu0 0.0
  %v1064 = vand.u32 %v84, 4294901760
  %v1065 = vsub.f32 %v84, %v1064
  %v1066 = vand.u32 %v1065, 4294901760
  %1067 = vmatmul.mubr.f32.gmra.mrb[0].mxu0 %v1066
  %v1068 = vpop.f32.mrb[0].mxu0
  %v1069 = vadd.f32 %v822, %v1068
  %v1070 = vpop.f32.mrb[0].mxu0
  %1071 = vmatprep.mubr.f32.mxu0 0.0
  %v1072 = vand.u32 %v87, 4294901760
  %v1073 = vsub.f32 %v87, %v1072
  %v1074 = vand.u32 %v1073, 4294901760
  %1075 = vmatmul.mubr.f32.gmra.mrb[0].mxu0 %v1074
  %v1076 = vpop.f32.mrb[0].mxu0
  %v1077 = vadd.f32 %v829, %v1076
  %v1078 = vpop.f32.mrb[0].mxu0
  %1079 = vmatprep.mubr.f32.mxu0 0.0
  %v1080 = vand.u32 %v90, 4294901760
  %v1081 = vsub.f32 %v90, %v1080
  %v1082 = vand.u32 %v1081, 4294901760
  %1083 = vmatmul.mubr.f32.gmra.mrb[0].mxu0 %v1082
  %v1084 = vpop.f32.mrb[0].mxu0
  %v1085 = vadd.f32 %v836, %v1084
  %v1086 = vpop.f32.mrb[0].mxu0
  %1087 = vmatprep.mubr.f32.mxu0 0.0
  %v1088 = vand.u32 %v93, 4294901760
  %v1089 = vsub.f32 %v93, %v1088
  %v1090 = vand.u32 %v1089, 4294901760
  %1091 = vmatmul.mubr.f32.gmra.mrb[0].mxu0 %v1090
  %v1092 = vpop.f32.mrb[0].mxu0
  %v1093 = vadd.f32 %v843, %v1092
  %v1094 = vpop.f32.mrb[0].mxu0
  %1095 = vmatprep.mubr.f32.mxu0 0.0
  %v1096 = vand.u32 %v96, 4294901760
  %v1097 = vsub.f32 %v96, %v1096
  %v1098 = vand.u32 %v1097, 4294901760
  %1099 = vmatmul.mubr.f32.gmra.mrb[0].mxu0 %v1098
  %v1100 = vpop.f32.mrb[0].mxu0
  %v1101 = vadd.f32 %v850, %v1100
  %v1102 = vpop.f32.mrb[0].mxu0
  %1103 = vmatprep.mubr.f32.mxu0 0.0
  %v1104 = vand.u32 %v99, 4294901760
  %v1105 = vsub.f32 %v99, %v1104
  %v1106 = vand.u32 %v1105, 4294901760
  %1107 = vmatmul.mubr.f32.gmra.mrb[0].mxu0 %v1106
  %v1108 = vpop.f32.mrb[0].mxu0
  %v1109 = vadd.f32 %v857, %v1108
  %v1110 = vpop.f32.mrb[0].mxu0
  %1111 = vmatprep.mubr.f32.mxu0 0.0
  %v1112 = vand.u32 %v102, 4294901760
  %v1113 = vsub.f32 %v102, %v1112
  %v1114 = vand.u32 %v1113, 4294901760
  %1115 = vmatmul.mubr.f32.gmra.mrb[0].mxu0 %v1114
  %v1116 = vpop.f32.mrb[0].mxu0
  %v1117 = vadd.f32 %v864, %v1116
  %v1118 = vpop.f32.mrb[0].mxu0
  %1119 = vmatprep.mubr.f32.mxu0 0.0
  %v1120 = vand.u32 %v105, 4294901760
  %v1121 = vsub.f32 %v105, %v1120
  %v1122 = vand.u32 %v1121, 4294901760
  %1123 = vmatmul.mubr.f32.gmra.mrb[0].mxu0 %v1122
  %v1124 = vpop.f32.mrb[0].mxu0
  %v1125 = vadd.f32 %v871, %v1124
  %v1126 = vpop.f32.mrb[0].mxu0
  %1127 = vmatprep.mubr.f32.mxu0 0.0
  %v1128 = vand.u32 %v108, 4294901760
  %v1129 = vsub.f32 %v108, %v1128
  %v1130 = vand.u32 %v1129, 4294901760
  %1131 = vmatmul.mubr.f32.gmra.mrb[0].mxu0 %v1130
  %v1132 = vpop.f32.mrb[0].mxu0
  %v1133 = vadd.f32 %v878, %v1132
  %v1134 = vpop.f32.mrb[0].mxu0
  %1135 = vmatprep.mubr.f32.mxu0 0.0
  %v1136 = vand.u32 %v111, 4294901760
  %v1137 = vsub.f32 %v111, %v1136
  %v1138 = vand.u32 %v1137, 4294901760
  %1139 = vmatmul.mubr.f32.gmra.mrb[0].mxu0 %v1138
  %v1140 = vpop.f32.mrb[0].mxu0
  %v1141 = vadd.f32 %v885, %v1140
  %v1142 = vpop.f32.mrb[0].mxu0
  %1143 = vmatprep.mubr.f32.mxu0 0.0
  %v1144 = vand.u32 %v114, 4294901760
  %v1145 = vsub.f32 %v114, %v1144
  %v1146 = vand.u32 %v1145, 4294901760
  %1147 = vmatmul.mubr.f32.gmra.mrb[0].mxu0 %v1146
  %v1148 = vpop.f32.mrb[0].mxu0
  %v1149 = vadd.f32 %v892, %v1148
  %v1150 = vpop.f32.mrb[0].mxu0
  %1151 = vmatprep.mubr.f32.mxu0 0.0
  %v1152 = vand.u32 %v117, 4294901760
  %v1153 = vsub.f32 %v117, %v1152
  %v1154 = vand.u32 %v1153, 4294901760
  %1155 = vmatmul.mubr.f32.gmra.mrb[0].mxu0 %v1154
  %v1156 = vpop.f32.mrb[0].mxu0
  %v1157 = vadd.f32 %v899, %v1156
  %v1158 = vpop.f32.mrb[0].mxu0
  %1159 = vmatprep.mubr.f32.mxu0 0.0
  %v1160 = vand.u32 %v120, 4294901760
  %v1161 = vsub.f32 %v120, %v1160
  %v1162 = vand.u32 %v1161, 4294901760
  %1163 = vmatmul.mubr.f32.gmra.mrb[0].mxu0 %v1162
  %v1164 = vpop.f32.mrb[0].mxu0
  %v1165 = vadd.f32 %v906, %v1164
  %v1166 = vpop.f32.mrb[0].mxu0
  %1167 = vmatprep.mubr.f32.mxu0 0.0
  %v1168 = vand.u32 %v123, 4294901760
  %v1169 = vsub.f32 %v123, %v1168
  %v1170 = vand.u32 %v1169, 4294901760
  %1171 = vmatmul.mubr.f32.gmra.mrb[0].mxu0 %v1170
  %v1172 = vpop.f32.mrb[0].mxu0
  %v1173 = vadd.f32 %v913, %v1172
  %v1174 = vpop.f32.mrb[0].mxu0
  %1175 = vmatprep.mubr.f32.mxu0 0.0
  %v1176 = vand.u32 %v126, 4294901760
  %v1177 = vsub.f32 %v126, %v1176
  %v1178 = vand.u32 %v1177, 4294901760
  %1179 = vmatmul.mubr.f32.gmra.mrb[0].mxu0 %v1178
  %v1180 = vpop.f32.mrb[0].mxu0
  %v1181 = vadd.f32 %v920, %v1180
  %v1182 = vpop.f32.mrb[0].mxu0
  %1183 = vmatprep.mubr.f32.mxu0 0.0
  %v1184 = vand.u32 %v129, 4294901760
  %v1185 = vsub.f32 %v129, %v1184
  %v1186 = vand.u32 %v1185, 4294901760
  %1187 = vmatmul.mubr.f32.gmra.mrb[0].mxu0 %v1186
  %v1188 = vpop.f32.mrb[0].mxu0
  %v1189 = vadd.f32 %v927, %v1188
  %v1190 = vpop.f32.mrb[0].mxu0
  %1191 = vmatprep.mubr.f32.mxu0 0.0
  %v1192 = vand.u32 %v132, 4294901760
  %v1193 = vsub.f32 %v132, %v1192
  %v1194 = vand.u32 %v1193, 4294901760
  %1195 = vmatmul.mubr.f32.gmra.mrb[0].mxu0 %v1194
  %v1196 = vpop.f32.mrb[0].mxu0
  %v1197 = vadd.f32 %v934, %v1196
  %v1198 = vpop.f32.mrb[0].mxu0
  %1199 = vmatprep.mubr.f32.mxu0 0.0
  %v1200 = vand.u32 %v135, 4294901760
  %v1201 = vsub.f32 %v135, %v1200
  %v1202 = vand.u32 %v1201, 4294901760
  %1203 = vmatmul.mubr.f32.gmra.mrb[0].mxu0 %v1202
  %v1204 = vpop.f32.mrb[0].mxu0
  %v1205 = vadd.f32 %v941, %v1204
  %v1206 = vpop.f32.mrb[0].mxu0
  %1207 = vmatprep.mubr.f32.mxu0 0.0
  %v1208 = vand.u32 %v138, 4294901760
  %v1209 = vsub.f32 %v138, %v1208
  %v1210 = vand.u32 %v1209, 4294901760
  %1211 = vmatmul.mubr.f32.gmra.mrb[0].mxu0 %v1210
  %v1212 = vpop.f32.mrb[0].mxu0
  %v1213 = vadd.f32 %v948, %v1212
  %v1214 = vpop.f32.mrb[0].mxu0
  %1215 = vdwg.mxu0
  %1216 = vmatprep.subr.mxu0 0.0
  %v1217 = vand.u32 %v35, 4294901760
  %v1218 = vsub.f32 %v35, %v1217
  %v1219 = vand.u32 %v1218, 4294901760
  %1220 = vmatpush1.msra.mxu0 %v1219
  %1221 = vmatprep.subr.mxu0 0.0
  %v1222 = vand.u32 %v36, 4294901760
  %v1223 = vsub.f32 %v36, %v1222
  %v1224 = vand.u32 %v1223, 4294901760
  %1225 = vmatpush1.msra.mxu0 %v1224
  %1226 = vmatprep.subr.mxu0 0.0
  %v1227 = vand.u32 %v37, 4294901760
  %v1228 = vsub.f32 %v37, %v1227
  %v1229 = vand.u32 %v1228, 4294901760
  %1230 = vmatpush1.msra.mxu0 %v1229
  %1231 = vmatprep.subr.mxu0 0.0
  %v1232 = vand.u32 %v38, 4294901760
  %v1233 = vsub.f32 %v38, %v1232
  %v1234 = vand.u32 %v1233, 4294901760
  %1235 = vmatpush1.msra.mxu0 %v1234
  %1236 = vmatprep.subr.mxu0 0.0
  %v1237 = vand.u32 %v39, 4294901760
  %v1238 = vsub.f32 %v39, %v1237
  %v1239 = vand.u32 %v1238, 4294901760
  %1240 = vmatpush1.msra.mxu0 %v1239
  %1241 = vmatprep.subr.mxu0 0.0
  %v1242 = vand.u32 %v40, 4294901760
  %v1243 = vsub.f32 %v40, %v1242
  %v1244 = vand.u32 %v1243, 4294901760
  %1245 = vmatpush1.msra.mxu0 %v1244
  %1246 = vmatprep.subr.mxu0 0.0
  %v1247 = vand.u32 %v41, 4294901760
  %v1248 = vsub.f32 %v41, %v1247
  %v1249 = vand.u32 %v1248, 4294901760
  %1250 = vmatpush1.msra.mxu0 %v1249
  %1251 = vmatprep.subr.mxu0 0.0
  %v1252 = vand.u32 %v42, 4294901760
  %v1253 = vsub.f32 %v42, %v1252
  %v1254 = vand.u32 %v1253, 4294901760
  %1255 = vmatpush1.msra.mxu0 %v1254
  %1256 = vmatprep.subr.mxu0 0.0
  %1257 = vmatpush1.msra.mxu0 0.0
  %1258 = vmatprep.subr.mxu0 0.0
  %1259 = vmatpush1.msra.mxu0 0.0
  %1260 = vmatprep.subr.mxu0 0.0
  %1261 = vmatpush1.msra.mxu0 0.0
  %1262 = vmatprep.subr.mxu0 0.0
  %1263 = vmatpush1.msra.mxu0 0.0
  %1264 = vmatprep.subr.mxu0 0.0
  %1265 = vmatpush1.msra.mxu0 0.0
  %1266 = vmatprep.subr.mxu0 0.0
  %1267 = vmatpush1.msra.mxu0 0.0
  %1268 = vmatprep.subr.mxu0 0.0
  %1269 = vmatpush1.msra.mxu0 0.0
  %1270 = vmatprep.subr.mxu0 0.0
  %1271 = vmatpush1.msra.mxu0 0.0
  %1272 = vmatprep.subr.mxu0 0.0
  %1273 = vmatpush1.msra.mxu0 0.0
  %1274 = vmatprep.subr.mxu0 0.0
  %1275 = vmatpush1.msra.mxu0 0.0
  %1276 = vmatprep.subr.mxu0 0.0
  %1277 = vmatpush1.msra.mxu0 0.0
  %1278 = vmatprep.subr.mxu0 0.0
  %1279 = vmatpush1.msra.mxu0 0.0
  %1280 = vmatprep.subr.mxu0 0.0
  %1281 = vmatpush1.msra.mxu0 0.0
  %1282 = vmatprep.subr.mxu0 0.0
  %1283 = vmatpush1.msra.mxu0 0.0
  %1284 = vmatprep.subr.mxu0 0.0
  %1285 = vmatpush1.msra.mxu0 0.0
  %1286 = vmatprep.subr.mxu0 0.0
  %1287 = vmatpush1.msra.mxu0 0.0
  %1288 = vmatprep.subr.mxu0 0.0
  %1289 = vmatpush1.msra.mxu0 0.0
  %1290 = vmatprep.subr.mxu0 0.0
  %1291 = vmatpush1.msra.mxu0 0.0
  %1292 = vmatprep.subr.mxu0 0.0
  %1293 = vmatpush1.msra.mxu0 0.0
  %1294 = vmatprep.subr.mxu0 0.0
  %1295 = vmatpush1.msra.mxu0 0.0
  %1296 = vmatprep.subr.mxu0 0.0
  %1297 = vmatpush1.msra.mxu0 0.0
  %1298 = vmatprep.subr.mxu0 0.0
  %1299 = vmatpush1.msra.mxu0 0.0
  %1300 = vmatprep.subr.mxu0 0.0
  %1301 = vmatpush1.msra.mxu0 0.0
  %1302 = vmatprep.subr.mxu0 0.0
  %1303 = vmatpush1.msra.mxu0 0.0
  %1304 = vmatprep.mubr.f32.mxu0 0.0
  %v1305 = vand.u32 %v69, 4294901760
  %1306 = vmatmul.mubr.f32.gmra.mrb[0].mxu0 %v1305
  %v1307 = vpop.f32.mrb[0].mxu0
  %v1308 = vadd.f32 %v1029, %v1307
  %v1309 = vpop.f32.mrb[0].mxu0
  %1310 = vmatprep.mubr.f32.mxu0 0.0
  %v1311 = vand.u32 %v72, 4294901760
  %1312 = vmatmul.mubr.f32.gmra.mrb[0].mxu0 %v1311
  %v1313 = vpop.f32.mrb[0].mxu0
  %v1314 = vadd.f32 %v1037, %v1313
  %v1315 = vpop.f32.mrb[0].mxu0
  %1316 = vmatprep.mubr.f32.mxu0 0.0
  %v1317 = vand.u32 %v75, 4294901760
  %1318 = vmatmul.mubr.f32.gmra.mrb[0].mxu0 %v1317
  %v1319 = vpop.f32.mrb[0].mxu0
  %v1320 = vadd.f32 %v1045, %v1319
  %v1321 = vpop.f32.mrb[0].mxu0
  %1322 = vmatprep.mubr.f32.mxu0 0.0
  %v1323 = vand.u32 %v78, 4294901760
  %1324 = vmatmul.mubr.f32.gmra.mrb[0].mxu0 %v1323
  %v1325 = vpop.f32.mrb[0].mxu0
  %v1326 = vadd.f32 %v1053, %v1325
  %v1327 = vpop.f32.mrb[0].mxu0
  %1328 = vmatprep.mubr.f32.mxu0 0.0
  %v1329 = vand.u32 %v81, 4294901760
  %1330 = vmatmul.mubr.f32.gmra.mrb[0].mxu0 %v1329
  %v1331 = vpop.f32.mrb[0].mxu0
  %v1332 = vadd.f32 %v1061, %v1331
  %v1333 = vpop.f32.mrb[0].mxu0
  %1334 = vmatprep.mubr.f32.mxu0 0.0
  %v1335 = vand.u32 %v84, 4294901760
  %1336 = vmatmul.mubr.f32.gmra.mrb[0].mxu0 %v1335
  %v1337 = vpop.f32.mrb[0].mxu0
  %v1338 = vadd.f32 %v1069, %v1337
  %v1339 = vpop.f32.mrb[0].mxu0
  %1340 = vmatprep.mubr.f32.mxu0 0.0
  %v1341 = vand.u32 %v87, 4294901760
  %1342 = vmatmul.mubr.f32.gmra.mrb[0].mxu0 %v1341
  %v1343 = vpop.f32.mrb[0].mxu0
  %v1344 = vadd.f32 %v1077, %v1343
  %v1345 = vpop.f32.mrb[0].mxu0
  %1346 = vmatprep.mubr.f32.mxu0 0.0
  %v1347 = vand.u32 %v90, 4294901760
  %1348 = vmatmul.mubr.f32.gmra.mrb[0].mxu0 %v1347
  %v1349 = vpop.f32.mrb[0].mxu0
  %v1350 = vadd.f32 %v1085, %v1349
  %v1351 = vpop.f32.mrb[0].mxu0
  %1352 = vmatprep.mubr.f32.mxu0 0.0
  %v1353 = vand.u32 %v93, 4294901760
  %1354 = vmatmul.mubr.f32.gmra.mrb[0].mxu0 %v1353
  %v1355 = vpop.f32.mrb[0].mxu0
  %v1356 = vadd.f32 %v1093, %v1355
  %v1357 = vpop.f32.mrb[0].mxu0
  %1358 = vmatprep.mubr.f32.mxu0 0.0
  %v1359 = vand.u32 %v96, 4294901760
  %1360 = vmatmul.mubr.f32.gmra.mrb[0].mxu0 %v1359
  %v1361 = vpop.f32.mrb[0].mxu0
  %v1362 = vadd.f32 %v1101, %v1361
  %v1363 = vpop.f32.mrb[0].mxu0
  %1364 = vmatprep.mubr.f32.mxu0 0.0
  %v1365 = vand.u32 %v99, 4294901760
  %1366 = vmatmul.mubr.f32.gmra.mrb[0].mxu0 %v1365
  %v1367 = vpop.f32.mrb[0].mxu0
  %v1368 = vadd.f32 %v1109, %v1367
  %v1369 = vpop.f32.mrb[0].mxu0
  %1370 = vmatprep.mubr.f32.mxu0 0.0
  %v1371 = vand.u32 %v102, 4294901760
  %1372 = vmatmul.mubr.f32.gmra.mrb[0].mxu0 %v1371
  %v1373 = vpop.f32.mrb[0].mxu0
  %v1374 = vadd.f32 %v1117, %v1373
  %v1375 = vpop.f32.mrb[0].mxu0
  %1376 = vmatprep.mubr.f32.mxu0 0.0
  %v1377 = vand.u32 %v105, 4294901760
  %1378 = vmatmul.mubr.f32.gmra.mrb[0].mxu0 %v1377
  %v1379 = vpop.f32.mrb[0].mxu0
  %v1380 = vadd.f32 %v1125, %v1379
  %v1381 = vpop.f32.mrb[0].mxu0
  %1382 = vmatprep.mubr.f32.mxu0 0.0
  %v1383 = vand.u32 %v108, 4294901760
  %1384 = vmatmul.mubr.f32.gmra.mrb[0].mxu0 %v1383
  %v1385 = vpop.f32.mrb[0].mxu0
  %v1386 = vadd.f32 %v1133, %v1385
  %v1387 = vpop.f32.mrb[0].mxu0
  %1388 = vmatprep.mubr.f32.mxu0 0.0
  %v1389 = vand.u32 %v111, 4294901760
  %1390 = vmatmul.mubr.f32.gmra.mrb[0].mxu0 %v1389
  %v1391 = vpop.f32.mrb[0].mxu0
  %v1392 = vadd.f32 %v1141, %v1391
  %v1393 = vpop.f32.mrb[0].mxu0
  %1394 = vmatprep.mubr.f32.mxu0 0.0
  %v1395 = vand.u32 %v114, 4294901760
  %1396 = vmatmul.mubr.f32.gmra.mrb[0].mxu0 %v1395
  %v1397 = vpop.f32.mrb[0].mxu0
  %v1398 = vadd.f32 %v1149, %v1397
  %v1399 = vpop.f32.mrb[0].mxu0
  %1400 = vmatprep.mubr.f32.mxu0 0.0
  %v1401 = vand.u32 %v117, 4294901760
  %1402 = vmatmul.mubr.f32.gmra.mrb[0].mxu0 %v1401
  %v1403 = vpop.f32.mrb[0].mxu0
  %v1404 = vadd.f32 %v1157, %v1403
  %v1405 = vpop.f32.mrb[0].mxu0
  %1406 = vmatprep.mubr.f32.mxu0 0.0
  %v1407 = vand.u32 %v120, 4294901760
  %1408 = vmatmul.mubr.f32.gmra.mrb[0].mxu0 %v1407
  %v1409 = vpop.f32.mrb[0].mxu0
  %v1410 = vadd.f32 %v1165, %v1409
  %v1411 = vpop.f32.mrb[0].mxu0
  %1412 = vmatprep.mubr.f32.mxu0 0.0
  %v1413 = vand.u32 %v123, 4294901760
  %1414 = vmatmul.mubr.f32.gmra.mrb[0].mxu0 %v1413
  %v1415 = vpop.f32.mrb[0].mxu0
  %v1416 = vadd.f32 %v1173, %v1415
  %v1417 = vpop.f32.mrb[0].mxu0
  %1418 = vmatprep.mubr.f32.mxu0 0.0
  %v1419 = vand.u32 %v126, 4294901760
  %1420 = vmatmul.mubr.f32.gmra.mrb[0].mxu0 %v1419
  %v1421 = vpop.f32.mrb[0].mxu0
  %v1422 = vadd.f32 %v1181, %v1421
  %v1423 = vpop.f32.mrb[0].mxu0
  %1424 = vmatprep.mubr.f32.mxu0 0.0
  %v1425 = vand.u32 %v129, 4294901760
  %1426 = vmatmul.mubr.f32.gmra.mrb[0].mxu0 %v1425
  %v1427 = vpop.f32.mrb[0].mxu0
  %v1428 = vadd.f32 %v1189, %v1427
  %v1429 = vpop.f32.mrb[0].mxu0
  %1430 = vmatprep.mubr.f32.mxu0 0.0
  %v1431 = vand.u32 %v132, 4294901760
  %1432 = vmatmul.mubr.f32.gmra.mrb[0].mxu0 %v1431
  %v1433 = vpop.f32.mrb[0].mxu0
  %v1434 = vadd.f32 %v1197, %v1433
  %v1435 = vpop.f32.mrb[0].mxu0
  %1436 = vmatprep.mubr.f32.mxu0 0.0
  %v1437 = vand.u32 %v135, 4294901760
  %1438 = vmatmul.mubr.f32.gmra.mrb[0].mxu0 %v1437
  %v1439 = vpop.f32.mrb[0].mxu0
  %v1440 = vadd.f32 %v1205, %v1439
  %v1441 = vpop.f32.mrb[0].mxu0
  %1442 = vmatprep.mubr.f32.mxu0 0.0
  %v1443 = vand.u32 %v138, 4294901760
  %1444 = vmatmul.mubr.f32.gmra.mrb[0].mxu0 %v1443
  %v1445 = vpop.f32.mrb[0].mxu0
  %v1446 = vadd.f32 %v1213, %v1445
  %v1447 = vpop.f32.mrb[0].mxu0
  %1448 = vdwg.mxu0
  %1449 = vmatprep.subr.mxu0 0.0
  %v1450 = vand.u32 %v35, 4294901760
  %1451 = vmatpush1.msra.mxu0 %v1450
  %1452 = vmatprep.subr.mxu0 0.0
  %v1453 = vand.u32 %v36, 4294901760
  %1454 = vmatpush1.msra.mxu0 %v1453
  %1455 = vmatprep.subr.mxu0 0.0
  %v1456 = vand.u32 %v37, 4294901760
  %1457 = vmatpush1.msra.mxu0 %v1456
  %1458 = vmatprep.subr.mxu0 0.0
  %v1459 = vand.u32 %v38, 4294901760
  %1460 = vmatpush1.msra.mxu0 %v1459
  %1461 = vmatprep.subr.mxu0 0.0
  %v1462 = vand.u32 %v39, 4294901760
  %1463 = vmatpush1.msra.mxu0 %v1462
  %1464 = vmatprep.subr.mxu0 0.0
  %v1465 = vand.u32 %v40, 4294901760
  %1466 = vmatpush1.msra.mxu0 %v1465
  %1467 = vmatprep.subr.mxu0 0.0
  %v1468 = vand.u32 %v41, 4294901760
  %1469 = vmatpush1.msra.mxu0 %v1468
  %1470 = vmatprep.subr.mxu0 0.0
  %v1471 = vand.u32 %v42, 4294901760
  %1472 = vmatpush1.msra.mxu0 %v1471
  %1473 = vmatprep.subr.mxu0 0.0
  %1474 = vmatpush1.msra.mxu0 0.0
  %1475 = vmatprep.subr.mxu0 0.0
  %1476 = vmatpush1.msra.mxu0 0.0
  %1477 = vmatprep.subr.mxu0 0.0
  %1478 = vmatpush1.msra.mxu0 0.0
  %1479 = vmatprep.subr.mxu0 0.0
  %1480 = vmatpush1.msra.mxu0 0.0
  %1481 = vmatprep.subr.mxu0 0.0
  %1482 = vmatpush1.msra.mxu0 0.0
  %1483 = vmatprep.subr.mxu0 0.0
  %1484 = vmatpush1.msra.mxu0 0.0
  %1485 = vmatprep.subr.mxu0 0.0
  %1486 = vmatpush1.msra.mxu0 0.0
  %1487 = vmatprep.subr.mxu0 0.0
  %1488 = vmatpush1.msra.mxu0 0.0
  %1489 = vmatprep.subr.mxu0 0.0
  %1490 = vmatpush1.msra.mxu0 0.0
  %1491 = vmatprep.subr.mxu0 0.0
  %1492 = vmatpush1.msra.mxu0 0.0
  %1493 = vmatprep.subr.mxu0 0.0
  %1494 = vmatpush1.msra.mxu0 0.0
  %1495 = vmatprep.subr.mxu0 0.0
  %1496 = vmatpush1.msra.mxu0 0.0
  %1497 = vmatprep.subr.mxu0 0.0
  %1498 = vmatpush1.msra.mxu0 0.0
  %1499 = vmatprep.subr.mxu0 0.0
  %1500 = vmatpush1.msra.mxu0 0.0
  %1501 = vmatprep.subr.mxu0 0.0
  %1502 = vmatpush1.msra.mxu0 0.0
  %1503 = vmatprep.subr.mxu0 0.0
  %1504 = vmatpush1.msra.mxu0 0.0
  %1505 = vmatprep.subr.mxu0 0.0
  %1506 = vmatpush1.msra.mxu0 0.0
  %1507 = vmatprep.subr.mxu0 0.0
  %1508 = vmatpush1.msra.mxu0 0.0
  %1509 = vmatprep.subr.mxu0 0.0
  %1510 = vmatpush1.msra.mxu0 0.0
  %1511 = vmatprep.subr.mxu0 0.0
  %1512 = vmatpush1.msra.mxu0 0.0
  %1513 = vmatprep.subr.mxu0 0.0
  %1514 = vmatpush1.msra.mxu0 0.0
  %1515 = vmatprep.subr.mxu0 0.0
  %1516 = vmatpush1.msra.mxu0 0.0
  %1517 = vmatprep.subr.mxu0 0.0
  %1518 = vmatpush1.msra.mxu0 0.0
  %1519 = vmatprep.subr.mxu0 0.0
  %1520 = vmatpush1.msra.mxu0 0.0
  %1521 = vmatprep.mubr.f32.mxu0 0.0
  %v1522 = vand.u32 %v69, 4294901760
  %1523 = vmatmul.mubr.f32.gmra.mrb[0].mxu0 %v1522
  %v1524 = vpop.f32.mrb[0].mxu0
  %v1525 = vadd.f32 %v1308, %v1524
  %v1526 = vpop.f32.mrb[0].mxu0
  %1527 = vmatprep.mubr.f32.mxu0 0.0
  %v1528 = vand.u32 %v72, 4294901760
  %1529 = vmatmul.mubr.f32.gmra.mrb[0].mxu0 %v1528
  %v1530 = vpop.f32.mrb[0].mxu0
  %v1531 = vadd.f32 %v1314, %v1530
  %v1532 = vpop.f32.mrb[0].mxu0
  %1533 = vmatprep.mubr.f32.mxu0 0.0
  %v1534 = vand.u32 %v75, 4294901760
  %1535 = vmatmul.mubr.f32.gmra.mrb[0].mxu0 %v1534
  %v1536 = vpop.f32.mrb[0].mxu0
  %v1537 = vadd.f32 %v1320, %v1536
  %v1538 = vpop.f32.mrb[0].mxu0
  %1539 = vmatprep.mubr.f32.mxu0 0.0
  %v1540 = vand.u32 %v78, 4294901760
  %1541 = vmatmul.mubr.f32.gmra.mrb[0].mxu0 %v1540
  %v1542 = vpop.f32.mrb[0].mxu0
  %v1543 = vadd.f32 %v1326, %v1542
  %v1544 = vpop.f32.mrb[0].mxu0
  %1545 = vmatprep.mubr.f32.mxu0 0.0
  %v1546 = vand.u32 %v81, 4294901760
  %1547 = vmatmul.mubr.f32.gmra.mrb[0].mxu0 %v1546
  %v1548 = vpop.f32.mrb[0].mxu0
  %v1549 = vadd.f32 %v1332, %v1548
  %v1550 = vpop.f32.mrb[0].mxu0
  %1551 = vmatprep.mubr.f32.mxu0 0.0
  %v1552 = vand.u32 %v84, 4294901760
  %1553 = vmatmul.mubr.f32.gmra.mrb[0].mxu0 %v1552
  %v1554 = vpop.f32.mrb[0].mxu0
  %v1555 = vadd.f32 %v1338, %v1554
  %v1556 = vpop.f32.mrb[0].mxu0
  %1557 = vmatprep.mubr.f32.mxu0 0.0
  %v1558 = vand.u32 %v87, 4294901760
  %1559 = vmatmul.mubr.f32.gmra.mrb[0].mxu0 %v1558
  %v1560 = vpop.f32.mrb[0].mxu0
  %v1561 = vadd.f32 %v1344, %v1560
  %v1562 = vpop.f32.mrb[0].mxu0
  %1563 = vmatprep.mubr.f32.mxu0 0.0
  %v1564 = vand.u32 %v90, 4294901760
  %1565 = vmatmul.mubr.f32.gmra.mrb[0].mxu0 %v1564
  %v1566 = vpop.f32.mrb[0].mxu0
  %v1567 = vadd.f32 %v1350, %v1566
  %v1568 = vpop.f32.mrb[0].mxu0
  %1569 = vmatprep.mubr.f32.mxu0 0.0
  %v1570 = vand.u32 %v93, 4294901760
  %1571 = vmatmul.mubr.f32.gmra.mrb[0].mxu0 %v1570
  %v1572 = vpop.f32.mrb[0].mxu0
  %v1573 = vadd.f32 %v1356, %v1572
  %v1574 = vpop.f32.mrb[0].mxu0
  %1575 = vmatprep.mubr.f32.mxu0 0.0
  %v1576 = vand.u32 %v96, 4294901760
  %1577 = vmatmul.mubr.f32.gmra.mrb[0].mxu0 %v1576
  %v1578 = vpop.f32.mrb[0].mxu0
  %v1579 = vadd.f32 %v1362, %v1578
  %v1580 = vpop.f32.mrb[0].mxu0
  %1581 = vmatprep.mubr.f32.mxu0 0.0
  %v1582 = vand.u32 %v99, 4294901760
  %1583 = vmatmul.mubr.f32.gmra.mrb[0].mxu0 %v1582
  %v1584 = vpop.f32.mrb[0].mxu0
  %v1585 = vadd.f32 %v1368, %v1584
  %v1586 = vpop.f32.mrb[0].mxu0
  %1587 = vmatprep.mubr.f32.mxu0 0.0
  %v1588 = vand.u32 %v102, 4294901760
  %1589 = vmatmul.mubr.f32.gmra.mrb[0].mxu0 %v1588
  %v1590 = vpop.f32.mrb[0].mxu0
  %v1591 = vadd.f32 %v1374, %v1590
  %v1592 = vpop.f32.mrb[0].mxu0
  %1593 = vmatprep.mubr.f32.mxu0 0.0
  %v1594 = vand.u32 %v105, 4294901760
  %1595 = vmatmul.mubr.f32.gmra.mrb[0].mxu0 %v1594
  %v1596 = vpop.f32.mrb[0].mxu0
  %v1597 = vadd.f32 %v1380, %v1596
  %v1598 = vpop.f32.mrb[0].mxu0
  %1599 = vmatprep.mubr.f32.mxu0 0.0
  %v1600 = vand.u32 %v108, 4294901760
  %1601 = vmatmul.mubr.f32.gmra.mrb[0].mxu0 %v1600
  %v1602 = vpop.f32.mrb[0].mxu0
  %v1603 = vadd.f32 %v1386, %v1602
  %v1604 = vpop.f32.mrb[0].mxu0
  %1605 = vmatprep.mubr.f32.mxu0 0.0
  %v1606 = vand.u32 %v111, 4294901760
  %1607 = vmatmul.mubr.f32.gmra.mrb[0].mxu0 %v1606
  %v1608 = vpop.f32.mrb[0].mxu0
  %v1609 = vadd.f32 %v1392, %v1608
  %v1610 = vpop.f32.mrb[0].mxu0
  %1611 = vmatprep.mubr.f32.mxu0 0.0
  %v1612 = vand.u32 %v114, 4294901760
  %1613 = vmatmul.mubr.f32.gmra.mrb[0].mxu0 %v1612
  %v1614 = vpop.f32.mrb[0].mxu0
  %v1615 = vadd.f32 %v1398, %v1614
  %v1616 = vpop.f32.mrb[0].mxu0
  %1617 = vmatprep.mubr.f32.mxu0 0.0
  %v1618 = vand.u32 %v117, 4294901760
  %1619 = vmatmul.mubr.f32.gmra.mrb[0].mxu0 %v1618
  %v1620 = vpop.f32.mrb[0].mxu0
  %v1621 = vadd.f32 %v1404, %v1620
  %v1622 = vpop.f32.mrb[0].mxu0
  %1623 = vmatprep.mubr.f32.mxu0 0.0
  %v1624 = vand.u32 %v120, 4294901760
  %1625 = vmatmul.mubr.f32.gmra.mrb[0].mxu0 %v1624
  %v1626 = vpop.f32.mrb[0].mxu0
  %v1627 = vadd.f32 %v1410, %v1626
  %v1628 = vpop.f32.mrb[0].mxu0
  %1629 = vmatprep.mubr.f32.mxu0 0.0
  %v1630 = vand.u32 %v123, 4294901760
  %1631 = vmatmul.mubr.f32.gmra.mrb[0].mxu0 %v1630
  %v1632 = vpop.f32.mrb[0].mxu0
  %v1633 = vadd.f32 %v1416, %v1632
  %v1634 = vpop.f32.mrb[0].mxu0
  %1635 = vmatprep.mubr.f32.mxu0 0.0
  %v1636 = vand.u32 %v126, 4294901760
  %1637 = vmatmul.mubr.f32.gmra.mrb[0].mxu0 %v1636
  %v1638 = vpop.f32.mrb[0].mxu0
  %v1639 = vadd.f32 %v1422, %v1638
  %v1640 = vpop.f32.mrb[0].mxu0
  %1641 = vmatprep.mubr.f32.mxu0 0.0
  %v1642 = vand.u32 %v129, 4294901760
  %1643 = vmatmul.mubr.f32.gmra.mrb[0].mxu0 %v1642
  %v1644 = vpop.f32.mrb[0].mxu0
  %v1645 = vadd.f32 %v1428, %v1644
  %v1646 = vpop.f32.mrb[0].mxu0
  %1647 = vmatprep.mubr.f32.mxu0 0.0
  %v1648 = vand.u32 %v132, 4294901760
  %1649 = vmatmul.mubr.f32.gmra.mrb[0].mxu0 %v1648
  %v1650 = vpop.f32.mrb[0].mxu0
  %v1651 = vadd.f32 %v1434, %v1650
  %v1652 = vpop.f32.mrb[0].mxu0
  %1653 = vmatprep.mubr.f32.mxu0 0.0
  %v1654 = vand.u32 %v135, 4294901760
  %1655 = vmatmul.mubr.f32.gmra.mrb[0].mxu0 %v1654
  %v1656 = vpop.f32.mrb[0].mxu0
  %v1657 = vadd.f32 %v1440, %v1656
  %v1658 = vpop.f32.mrb[0].mxu0
  %1659 = vmatprep.mubr.f32.mxu0 0.0
  %v1660 = vand.u32 %v138, 4294901760
  %1661 = vmatmul.mubr.f32.gmra.mrb[0].mxu0 %v1660
  %v1662 = vpop.f32.mrb[0].mxu0
  %v1663 = vadd.f32 %v1446, %v1662
  %v1664 = vpop.f32.mrb[0].mxu0
  %1665 = vdwg.mxu0
  %vm1666 = vcmp.ge.f32.partialorder %v1525, 0.0
  %vm1667 = vcmp.ge.f32.partialorder %v1531, 0.0
  %vm1668 = vcmp.ge.f32.partialorder %v1537, 0.0
  %vm1669 = vcmp.ge.f32.partialorder %v1543, 0.0
  %vm1670 = vcmp.ge.f32.partialorder %v1549, 0.0
  %vm1671 = vcmp.ge.f32.partialorder %v1555, 0.0
  %vm1672 = vcmp.ge.f32.partialorder %v1561, 0.0
  %vm1673 = vcmp.ge.f32.partialorder %v1567, 0.0
  %vm1674 = vcmp.ge.f32.partialorder %v1573, 0.0
  %vm1675 = vcmp.ge.f32.partialorder %v1579, 0.0
  %vm1676 = vcmp.ge.f32.partialorder %v1585, 0.0
  %vm1677 = vcmp.ge.f32.partialorder %v1591, 0.0
  %vm1678 = vcmp.ge.f32.partialorder %v1597, 0.0
  %vm1679 = vcmp.ge.f32.partialorder %v1603, 0.0
  %vm1680 = vcmp.ge.f32.partialorder %v1609, 0.0
  %vm1681 = vcmp.ge.f32.partialorder %v1615, 0.0
  %vm1682 = vcmp.ge.f32.partialorder %v1621, 0.0
  %vm1683 = vcmp.ge.f32.partialorder %v1627, 0.0
  %vm1684 = vcmp.ge.f32.partialorder %v1633, 0.0
  %vm1685 = vcmp.ge.f32.partialorder %v1639, 0.0
  %vm1686 = vcmp.ge.f32.partialorder %v1645, 0.0
  %vm1687 = vcmp.ge.f32.partialorder %v1651, 0.0
  %vm1688 = vcmp.ge.f32.partialorder %v1657, 0.0
  %vm1689 = vcmp.ge.f32.partialorder %v1663, 0.0
  %v1690 = vmul.f32 %v1525, 0.01
  %v1691 = vmul.f32 %v1531, 0.01
  %v1692 = vmul.f32 %v1537, 0.01
  %v1693 = vmul.f32 %v1543, 0.01
  %v1694 = vmul.f32 %v1549, 0.01
  %v1695 = vmul.f32 %v1555, 0.01
  %v1696 = vmul.f32 %v1561, 0.01
  %v1697 = vmul.f32 %v1567, 0.01
  %v1698 = vmul.f32 %v1573, 0.01
  %v1699 = vmul.f32 %v1579, 0.01
  %v1700 = vmul.f32 %v1585, 0.01
  %v1701 = vmul.f32 %v1591, 0.01
  %v1702 = vmul.f32 %v1597, 0.01
  %v1703 = vmul.f32 %v1603, 0.01
  %v1704 = vmul.f32 %v1609, 0.01
  %v1705 = vmul.f32 %v1615, 0.01
  %v1706 = vmul.f32 %v1621, 0.01
  %v1707 = vmul.f32 %v1627, 0.01
  %v1708 = vmul.f32 %v1633, 0.01
  %v1709 = vmul.f32 %v1639, 0.01
  %v1710 = vmul.f32 %v1645, 0.01
  %v1711 = vmul.f32 %v1651, 0.01
  %v1712 = vmul.f32 %v1657, 0.01
  %v1713 = vmul.f32 %v1663, 0.01
  %v1714 = vsel %vm1666, %v1525, %v1690
  %v1715 = vsel %vm1667, %v1531, %v1691
  %v1716 = vsel %vm1668, %v1537, %v1692
  %v1717 = vsel %vm1669, %v1543, %v1693
  %v1718 = vsel %vm1670, %v1549, %v1694
  %v1719 = vsel %vm1671, %v1555, %v1695
  %v1720 = vsel %vm1672, %v1561, %v1696
  %v1721 = vsel %vm1673, %v1567, %v1697
  %v1722 = vsel %vm1674, %v1573, %v1698
  %v1723 = vsel %vm1675, %v1579, %v1699
  %v1724 = vsel %vm1676, %v1585, %v1700
  %v1725 = vsel %vm1677, %v1591, %v1701
  %v1726 = vsel %vm1678, %v1597, %v1702
  %v1727 = vsel %vm1679, %v1603, %v1703
  %v1728 = vsel %vm1680, %v1609, %v1704
  %v1729 = vsel %vm1681, %v1615, %v1705
  %v1730 = vsel %vm1682, %v1621, %v1706
  %v1731 = vsel %vm1683, %v1627, %v1707
  %v1732 = vsel %vm1684, %v1633, %v1708
  %v1733 = vsel %vm1685, %v1639, %v1709
  %v1734 = vsel %vm1686, %v1645, %v1710
  %v1735 = vsel %vm1687, %v1651, %v1711
  %v1736 = vsel %vm1688, %v1657, %v1712
  %v1737 = vsel %vm1689, %v1663, %v1713
  %v1738 = vmax.f32 %v1714, %v1716
  %v1739 = vmax.f32 %v1715, %v1717
  %v1740 = vmax.f32 %v1716, %v1718
  %v1741 = vmax.f32 %v1717, %v1719
  %v1742 = vmax.f32 %v1718, %v1720
  %v1743 = vmax.f32 %v1719, %v1721
  %v1744 = vmax.f32 %v1720, %v1722
  %v1745 = vmax.f32 %v1721, %v1723
  %v1746 = vmax.f32 %v1722, %v1724
  %v1747 = vmax.f32 %v1723, %v1725
  %v1748 = vmax.f32 %v1724, %v1726
  %v1749 = vmax.f32 %v1725, %v1727
  %v1750 = vmax.f32 %v1726, %v1728
  %v1751 = vmax.f32 %v1727, %v1729
  %v1752 = vmax.f32 %v1728, %v1730
  %v1753 = vmax.f32 %v1729, %v1731
  %v1754 = vmax.f32 %v1738, %v1718
  %v1755 = vmax.f32 %v1739, %v1719
  %v1756 = vmax.f32 %v1740, %v1720
  %v1757 = vmax.f32 %v1741, %v1721
  %v1758 = vmax.f32 %v1742, %v1722
  %v1759 = vmax.f32 %v1743, %v1723
  %v1760 = vmax.f32 %v1744, %v1724
  %v1761 = vmax.f32 %v1745, %v1725
  %v1762 = vmax.f32 %v1746, %v1726
  %v1763 = vmax.f32 %v1747, %v1727
  %v1764 = vmax.f32 %v1748, %v1728
  %v1765 = vmax.f32 %v1749, %v1729
  %v1766 = vmax.f32 %v1750, %v1730
  %v1767 = vmax.f32 %v1751, %v1731
  %v1768 = vmax.f32 %v1752, %v1732
  %v1769 = vmax.f32 %v1753, %v1733
  %v1770 = vmax.f32 %v1754, %v1720
  %v1771 = vmax.f32 %v1755, %v1721
  %v1772 = vmax.f32 %v1756, %v1722
  %v1773 = vmax.f32 %v1757, %v1723
  %v1774 = vmax.f32 %v1758, %v1724
  %v1775 = vmax.f32 %v1759, %v1725
  %v1776 = vmax.f32 %v1760, %v1726
  %v1777 = vmax.f32 %v1761, %v1727
  %v1778 = vmax.f32 %v1762, %v1728
  %v1779 = vmax.f32 %v1763, %v1729
  %v1780 = vmax.f32 %v1764, %v1730
  %v1781 = vmax.f32 %v1765, %v1731
  %v1782 = vmax.f32 %v1766, %v1732
  %v1783 = vmax.f32 %v1767, %v1733
  %v1784 = vmax.f32 %v1768, %v1734
  %v1785 = vmax.f32 %v1769, %v1735
  %v1786 = vmax.f32 %v1770, %v1722
  %v1787 = vmax.f32 %v1771, %v1723
  %v1788 = vmax.f32 %v1772, %v1724
  %v1789 = vmax.f32 %v1773, %v1725
  %v1790 = vmax.f32 %v1774, %v1726
  %v1791 = vmax.f32 %v1775, %v1727
  %v1792 = vmax.f32 %v1776, %v1728
  %v1793 = vmax.f32 %v1777, %v1729
  %v1794 = vmax.f32 %v1778, %v1730
  %v1795 = vmax.f32 %v1779, %v1731
  %v1796 = vmax.f32 %v1780, %v1732
  %v1797 = vmax.f32 %v1781, %v1733
  %v1798 = vmax.f32 %v1782, %v1734
  %v1799 = vmax.f32 %v1783, %v1735
  %v1800 = vmax.f32 %v1784, %v1736
  %v1801 = vmax.f32 %v1785, %v1737
  %v1802 = vld [vmem:[%s2] sm:$0xff]
  %v1803 = vld [vmem:[%s2 + $0x8] sm:$0xff]
  %v1804 = vld [vmem:[%s2 + $0x10] sm:$0xff]
  %v1805 = vld [vmem:[%s2 + $0x18] sm:$0xff]
  %v1806 = vld [vmem:[%s3] sm:$0xff]
  %v1807 = vld [vmem:[%s3 + $0x8] sm:$0xff]
  %v1808 = vld [vmem:[%s3 + $0x10] sm:$0xff]
  %v1809 = vld [vmem:[%s3 + $0x18] sm:$0xff]
  %1811 = vset.pattern.permute.xlu0 0
  %1812 = vperm.xlu0 %1811, %v1806
  %v1813 = vpop.permute.xlu0 %1812
  %1816 = vset.pattern.permute.xlu0 0
  %1817 = vperm.xlu0 %1816, %v1807
  %v1818 = vpop.permute.xlu0 %1817
  %1821 = vset.pattern.permute.xlu0 0
  %1822 = vperm.xlu0 %1821, %v1808
  %v1823 = vpop.permute.xlu0 %1822
  %1826 = vset.pattern.permute.xlu0 0
  %1827 = vperm.xlu0 %1826, %v1809
  %v1828 = vpop.permute.xlu0 %1827
  %1830 = vmatprep.subr.mxu0 0.0
  %v1831 = vand.u32 %v1786, 4294901760
  %1832 = vmatpush1.msra.mxu0 %v1831
  %1833 = vmatprep.subr.mxu0 0.0
  %v1834 = vand.u32 %v1787, 4294901760
  %1835 = vmatpush1.msra.mxu0 %v1834
  %1836 = vmatprep.subr.mxu0 0.0
  %v1837 = vand.u32 %v1788, 4294901760
  %1838 = vmatpush1.msra.mxu0 %v1837
  %1839 = vmatprep.subr.mxu0 0.0
  %v1840 = vand.u32 %v1789, 4294901760
  %1841 = vmatpush1.msra.mxu0 %v1840
  %1842 = vmatprep.subr.mxu0 0.0
  %v1843 = vand.u32 %v1790, 4294901760
  %1844 = vmatpush1.msra.mxu0 %v1843
  %1845 = vmatprep.subr.mxu0 0.0
  %v1846 = vand.u32 %v1791, 4294901760
  %1847 = vmatpush1.msra.mxu0 %v1846
  %1848 = vmatprep.subr.mxu0 0.0
  %v1849 = vand.u32 %v1792, 4294901760
  %1850 = vmatpush1.msra.mxu0 %v1849
  %1851 = vmatprep.subr.mxu0 0.0
  %v1852 = vand.u32 %v1793, 4294901760
  %1853 = vmatpush1.msra.mxu0 %v1852
  %1854 = vmatprep.subr.mxu0 0.0
  %v1855 = vand.u32 %v1794, 4294901760
  %1856 = vmatpush1.msra.mxu0 %v1855
  %1857 = vmatprep.subr.mxu0 0.0
  %v1858 = vand.u32 %v1795, 4294901760
  %1859 = vmatpush1.msra.mxu0 %v1858
  %1860 = vmatprep.subr.mxu0 0.0
  %v1861 = vand.u32 %v1796, 4294901760
  %1862 = vmatpush1.msra.mxu0 %v1861
  %1863 = vmatprep.subr.mxu0 0.0
  %v1864 = vand.u32 %v1797, 4294901760
  %1865 = vmatpush1.msra.mxu0 %v1864
  %1866 = vmatprep.subr.mxu0 0.0
  %v1867 = vand.u32 %v1798, 4294901760
  %1868 = vmatpush1.msra.mxu0 %v1867
  %1869 = vmatprep.subr.mxu0 0.0
  %v1870 = vand.u32 %v1799, 4294901760
  %1871 = vmatpush1.msra.mxu0 %v1870
  %1872 = vmatprep.subr.mxu0 0.0
  %v1873 = vand.u32 %v1800, 4294901760
  %1874 = vmatpush1.msra.mxu0 %v1873
  %1875 = vmatprep.subr.mxu0 0.0
  %v1876 = vand.u32 %v1801, 4294901760
  %1877 = vmatpush1.msra.mxu0 %v1876
  %1878 = vmatprep.subr.mxu0 0.0
  %1879 = vmatpush1.msra.mxu0 0.0
  %1880 = vmatprep.subr.mxu0 0.0
  %1881 = vmatpush1.msra.mxu0 0.0
  %1882 = vmatprep.subr.mxu0 0.0
  %1883 = vmatpush1.msra.mxu0 0.0
  %1884 = vmatprep.subr.mxu0 0.0
  %1885 = vmatpush1.msra.mxu0 0.0
  %1886 = vmatprep.subr.mxu0 0.0
  %1887 = vmatpush1.msra.mxu0 0.0
  %1888 = vmatprep.subr.mxu0 0.0
  %1889 = vmatpush1.msra.mxu0 0.0
  %1890 = vmatprep.subr.mxu0 0.0
  %1891 = vmatpush1.msra.mxu0 0.0
  %1892 = vmatprep.subr.mxu0 0.0
  %1893 = vmatpush1.msra.mxu0 0.0
  %1894 = vmatprep.subr.mxu0 0.0
  %1895 = vmatpush1.msra.mxu0 0.0
  %1896 = vmatprep.subr.mxu0 0.0
  %1897 = vmatpush1.msra.mxu0 0.0
  %1898 = vmatprep.subr.mxu0 0.0
  %1899 = vmatpush1.msra.mxu0 0.0
  %1900 = vmatprep.subr.mxu0 0.0
  %1901 = vmatpush1.msra.mxu0 0.0
  %1902 = vmatprep.subr.mxu0 0.0
  %1903 = vmatpush1.msra.mxu0 0.0
  %1904 = vmatprep.subr.mxu0 0.0
  %1905 = vmatpush1.msra.mxu0 0.0
  %1906 = vmatprep.subr.mxu0 0.0
  %1907 = vmatpush1.msra.mxu0 0.0
  %1908 = vmatprep.subr.mxu0 0.0
  %1909 = vmatpush1.msra.mxu0 0.0
  %1910 = vmatprep.mubr.f32.mxu0 0.0
  %v1911 = vand.u32 %v1802, 4294901760
  %v1912 = vsub.f32 %v1802, %v1911
  %v1913 = vand.u32 %v1912, 4294901760
  %v1914 = vsub.f32 %v1912, %v1913
  %v1915 = vand.u32 %v1914, 4294901760
  %1916 = vmatmul.mubr.f32.gmra.mrb[0].mxu0 %v1915
  %v1917 = vpop.f32.mrb[0].mxu0
  %v1918 = vadd.f32 %v1813, %v1917
  %v1919 = vpop.f32.mrb[0].mxu0
  %1920 = vmatprep.mubr.f32.mxu0 0.0
  %v1921 = vand.u32 %v1803, 4294901760
  %v1922 = vsub.f32 %v1803, %v1921
  %v1923 = vand.u32 %v1922, 4294901760
  %v1924 = vsub.f32 %v1922, %v1923
  %v1925 = vand.u32 %v1924, 4294901760
  %1926 = vmatmul.mubr.f32.gmra.mrb[0].mxu0 %v1925
  %v1927 = vpop.f32.mrb[0].mxu0
  %v1928 = vadd.f32 %v1818, %v1927
  %v1929 = vpop.f32.mrb[0].mxu0
  %1930 = vmatprep.mubr.f32.mxu0 0.0
  %v1931 = vand.u32 %v1804, 4294901760
  %v1932 = vsub.f32 %v1804, %v1931
  %v1933 = vand.u32 %v1932, 4294901760
  %v1934 = vsub.f32 %v1932, %v1933
  %v1935 = vand.u32 %v1934, 4294901760
  %1936 = vmatmul.mubr.f32.gmra.mrb[0].mxu0 %v1935
  %v1937 = vpop.f32.mrb[0].mxu0
  %v1938 = vadd.f32 %v1823, %v1937
  %v1939 = vpop.f32.mrb[0].mxu0
  %1940 = vmatprep.mubr.f32.mxu0 0.0
  %v1941 = vand.u32 %v1805, 4294901760
  %v1942 = vsub.f32 %v1805, %v1941
  %v1943 = vand.u32 %v1942, 4294901760
  %v1944 = vsub.f32 %v1942, %v1943
  %v1945 = vand.u32 %v1944, 4294901760
  %1946 = vmatmul.mubr.f32.gmra.mrb[0].mxu0 %v1945
  %v1947 = vpop.f32.mrb[0].mxu0
  %v1948 = vadd.f32 %v1828, %v1947
  %v1949 = vpop.f32.mrb[0].mxu0
  %1950 = vdwg.mxu0
  %1951 = vmatprep.subr.mxu0 0.0
  %v1952 = vand.u32 %v1786, 4294901760
  %v1953 = vsub.f32 %v1786, %v1952
  %v1954 = vand.u32 %v1953, 4294901760
  %v1955 = vsub.f32 %v1953, %v1954
  %v1956 = vand.u32 %v1955, 4294901760
  %1957 = vmatpush1.msra.mxu0 %v1956
  %1958 = vmatprep.subr.mxu0 0.0
  %v1959 = vand.u32 %v1787, 4294901760
  %v1960 = vsub.f32 %v1787, %v1959
  %v1961 = vand.u32 %v1960, 4294901760
  %v1962 = vsub.f32 %v1960, %v1961
  %v1963 = vand.u32 %v1962, 4294901760
  %1964 = vmatpush1.msra.mxu0 %v1963
  %1965 = vmatprep.subr.mxu0 0.0
  %v1966 = vand.u32 %v1788, 4294901760
  %v1967 = vsub.f32 %v1788, %v1966
  %v1968 = vand.u32 %v1967, 4294901760
  %v1969 = vsub.f32 %v1967, %v1968
  %v1970 = vand.u32 %v1969, 4294901760
  %1971 = vmatpush1.msra.mxu0 %v1970
  %1972 = vmatprep.subr.mxu0 0.0
  %v1973 = vand.u32 %v1789, 4294901760
  %v1974 = vsub.f32 %v1789, %v1973
  %v1975 = vand.u32 %v1974, 4294901760
  %v1976 = vsub.f32 %v1974, %v1975
  %v1977 = vand.u32 %v1976, 4294901760
  %1978 = vmatpush1.msra.mxu0 %v1977
  %1979 = vmatprep.subr.mxu0 0.0
  %v1980 = vand.u32 %v1790, 4294901760
  %v1981 = vsub.f32 %v1790, %v1980
  %v1982 = vand.u32 %v1981, 4294901760
  %v1983 = vsub.f32 %v1981, %v1982
  %v1984 = vand.u32 %v1983, 4294901760
  %1985 = vmatpush1.msra.mxu0 %v1984
  %1986 = vmatprep.subr.mxu0 0.0
  %v1987 = vand.u32 %v1791, 4294901760
  %v1988 = vsub.f32 %v1791, %v1987
  %v1989 = vand.u32 %v1988, 4294901760
  %v1990 = vsub.f32 %v1988, %v1989
  %v1991 = vand.u32 %v1990, 4294901760
  %1992 = vmatpush1.msra.mxu0 %v1991
  %1993 = vmatprep.subr.mxu0 0.0
  %v1994 = vand.u32 %v1792, 4294901760
  %v1995 = vsub.f32 %v1792, %v1994
  %v1996 = vand.u32 %v1995, 4294901760
  %v1997 = vsub.f32 %v1995, %v1996
  %v1998 = vand.u32 %v1997, 4294901760
  %1999 = vmatpush1.msra.mxu0 %v1998
  %2000 = vmatprep.subr.mxu0 0.0
  %v2001 = vand.u32 %v1793, 4294901760
  %v2002 = vsub.f32 %v1793, %v2001
  %v2003 = vand.u32 %v2002, 4294901760
  %v2004 = vsub.f32 %v2002, %v2003
  %v2005 = vand.u32 %v2004, 4294901760
  %2006 = vmatpush1.msra.mxu0 %v2005
  %2007 = vmatprep.subr.mxu0 0.0
  %v2008 = vand.u32 %v1794, 4294901760
  %v2009 = vsub.f32 %v1794, %v2008
  %v2010 = vand.u32 %v2009, 4294901760
  %v2011 = vsub.f32 %v2009, %v2010
  %v2012 = vand.u32 %v2011, 4294901760
  %2013 = vmatpush1.msra.mxu0 %v2012
  %2014 = vmatprep.subr.mxu0 0.0
  %v2015 = vand.u32 %v1795, 4294901760
  %v2016 = vsub.f32 %v1795, %v2015
  %v2017 = vand.u32 %v2016, 4294901760
  %v2018 = vsub.f32 %v2016, %v2017
  %v2019 = vand.u32 %v2018, 4294901760
  %2020 = vmatpush1.msra.mxu0 %v2019
  %2021 = vmatprep.subr.mxu0 0.0
  %v2022 = vand.u32 %v1796, 4294901760
  %v2023 = vsub.f32 %v1796, %v2022
  %v2024 = vand.u32 %v2023, 4294901760
  %v2025 = vsub.f32 %v2023, %v2024
  %v2026 = vand.u32 %v2025, 4294901760
  %2027 = vmatpush1.msra.mxu0 %v2026
  %2028 = vmatprep.subr.mxu0 0.0
  %v2029 = vand.u32 %v1797, 4294901760
  %v2030 = vsub.f32 %v1797, %v2029
  %v2031 = vand.u32 %v2030, 4294901760
  %v2032 = vsub.f32 %v2030, %v2031
  %v2033 = vand.u32 %v2032, 4294901760
  %2034 = vmatpush1.msra.mxu0 %v2033
  %2035 = vmatprep.subr.mxu0 0.0
  %v2036 = vand.u32 %v1798, 4294901760
  %v2037 = vsub.f32 %v1798, %v2036
  %v2038 = vand.u32 %v2037, 4294901760
  %v2039 = vsub.f32 %v2037, %v2038
  %v2040 = vand.u32 %v2039, 4294901760
  %2041 = vmatpush1.msra.mxu0 %v2040
  %2042 = vmatprep.subr.mxu0 0.0
  %v2043 = vand.u32 %v1799, 4294901760
  %v2044 = vsub.f32 %v1799, %v2043
  %v2045 = vand.u32 %v2044, 4294901760
  %v2046 = vsub.f32 %v2044, %v2045
  %v2047 = vand.u32 %v2046, 4294901760
  %2048 = vmatpush1.msra.mxu0 %v2047
  %2049 = vmatprep.subr.mxu0 0.0
  %v2050 = vand.u32 %v1800, 4294901760
  %v2051 = vsub.f32 %v1800, %v2050
  %v2052 = vand.u32 %v2051, 4294901760
  %v2053 = vsub.f32 %v2051, %v2052
  %v2054 = vand.u32 %v2053, 4294901760
  %2055 = vmatpush1.msra.mxu0 %v2054
  %2056 = vmatprep.subr.mxu0 0.0
  %v2057 = vand.u32 %v1801, 4294901760
  %v2058 = vsub.f32 %v1801, %v2057
  %v2059 = vand.u32 %v2058, 4294901760
  %v2060 = vsub.f32 %v2058, %v2059
  %v2061 = vand.u32 %v2060, 4294901760
  %2062 = vmatpush1.msra.mxu0 %v2061
  %2063 = vmatprep.subr.mxu0 0.0
  %2064 = vmatpush1.msra.mxu0 0.0
  %2065 = vmatprep.subr.mxu0 0.0
  %2066 = vmatpush1.msra.mxu0 0.0
  %2067 = vmatprep.subr.mxu0 0.0
  %2068 = vmatpush1.msra.mxu0 0.0
  %2069 = vmatprep.subr.mxu0 0.0
  %2070 = vmatpush1.msra.mxu0 0.0
  %2071 = vmatprep.subr.mxu0 0.0
  %2072 = vmatpush1.msra.mxu0 0.0
  %2073 = vmatprep.subr.mxu0 0.0
  %2074 = vmatpush1.msra.mxu0 0.0
  %2075 = vmatprep.subr.mxu0 0.0
  %2076 = vmatpush1.msra.mxu0 0.0
  %2077 = vmatprep.subr.mxu0 0.0
  %2078 = vmatpush1.msra.mxu0 0.0
  %2079 = vmatprep.subr.mxu0 0.0
  %2080 = vmatpush1.msra.mxu0 0.0
  %2081 = vmatprep.subr.mxu0 0.0
  %2082 = vmatpush1.msra.mxu0 0.0
  %2083 = vmatprep.subr.mxu0 0.0
  %2084 = vmatpush1.msra.mxu0 0.0
  %2085 = vmatprep.subr.mxu0 0.0
  %2086 = vmatpush1.msra.mxu0 0.0
  %2087 = vmatprep.subr.mxu0 0.0
  %2088 = vmatpush1.msra.mxu0 0.0
  %2089 = vmatprep.subr.mxu0 0.0
  %2090 = vmatpush1.msra.mxu0 0.0
  %2091 = vmatprep.subr.mxu0 0.0
  %2092 = vmatpush1.msra.mxu0 0.0
  %2093 = vmatprep.subr.mxu0 0.0
  %2094 = vmatpush1.msra.mxu0 0.0
  %2095 = vmatprep.mubr.f32.mxu0 0.0
  %v2096 = vand.u32 %v1802, 4294901760
  %2097 = vmatmul.mubr.f32.gmra.mrb[0].mxu0 %v2096
  %v2098 = vpop.f32.mrb[0].mxu0
  %v2099 = vadd.f32 %v1918, %v2098
  %v2100 = vpop.f32.mrb[0].mxu0
  %2101 = vmatprep.mubr.f32.mxu0 0.0
  %v2102 = vand.u32 %v1803, 4294901760
  %2103 = vmatmul.mubr.f32.gmra.mrb[0].mxu0 %v2102
  %v2104 = vpop.f32.mrb[0].mxu0
  %v2105 = vadd.f32 %v1928, %v2104
  %v2106 = vpop.f32.mrb[0].mxu0
  %2107 = vmatprep.mubr.f32.mxu0 0.0
  %v2108 = vand.u32 %v1804, 4294901760
  %2109 = vmatmul.mubr.f32.gmra.mrb[0].mxu0 %v2108
  %v2110 = vpop.f32.mrb[0].mxu0
  %v2111 = vadd.f32 %v1938, %v2110
  %v2112 = vpop.f32.mrb[0].mxu0
  %2113 = vmatprep.mubr.f32.mxu0 0.0
  %v2114 = vand.u32 %v1805, 4294901760
  %2115 = vmatmul.mubr.f32.gmra.mrb[0].mxu0 %v2114
  %v2116 = vpop.f32.mrb[0].mxu0
  %v2117 = vadd.f32 %v1948, %v2116
  %v2118 = vpop.f32.mrb[0].mxu0
  %2119 = vdwg.mxu0
  %2120 = vmatprep.subr.mxu0 0.0
  %v2121 = vand.u32 %v1786, 4294901760
  %v2122 = vsub.f32 %v1786, %v2121
  %2123 = vmatpush1.msra.mxu0 %v2122
  %2124 = vmatprep.subr.mxu0 0.0
  %v2125 = vand.u32 %v1787, 4294901760
  %v2126 = vsub.f32 %v1787, %v2125
  %2127 = vmatpush1.msra.mxu0 %v2126
  %2128 = vmatprep.subr.mxu0 0.0
  %v2129 = vand.u32 %v1788, 4294901760
  %v2130 = vsub.f32 %v1788, %v2129
  %2131 = vmatpush1.msra.mxu0 %v2130
  %2132 = vmatprep.subr.mxu0 0.0
  %v2133 = vand.u32 %v1789, 4294901760
  %v2134 = vsub.f32 %v1789, %v2133
  %2135 = vmatpush1.msra.mxu0 %v2134
  %2136 = vmatprep.subr.mxu0 0.0
  %v2137 = vand.u32 %v1790, 4294901760
  %v2138 = vsub.f32 %v1790, %v2137
  %2139 = vmatpush1.msra.mxu0 %v2138
  %2140 = vmatprep.subr.mxu0 0.0
  %v2141 = vand.u32 %v1791, 4294901760
  %v2142 = vsub.f32 %v1791, %v2141
  %2143 = vmatpush1.msra.mxu0 %v2142
  %2144 = vmatprep.subr.mxu0 0.0
  %v2145 = vand.u32 %v1792, 4294901760
  %v2146 = vsub.f32 %v1792, %v2145
  %2147 = vmatpush1.msra.mxu0 %v2146
  %2148 = vmatprep.subr.mxu0 0.0
  %v2149 = vand.u32 %v1793, 4294901760
  %v2150 = vsub.f32 %v1793, %v2149
  %2151 = vmatpush1.msra.mxu0 %v2150
  %2152 = vmatprep.subr.mxu0 0.0
  %v2153 = vand.u32 %v1794, 4294901760
  %v2154 = vsub.f32 %v1794, %v2153
  %2155 = vmatpush1.msra.mxu0 %v2154
  %2156 = vmatprep.subr.mxu0 0.0
  %v2157 = vand.u32 %v1795, 4294901760
  %v2158 = vsub.f32 %v1795, %v2157
  %2159 = vmatpush1.msra.mxu0 %v2158
  %2160 = vmatprep.subr.mxu0 0.0
  %v2161 = vand.u32 %v1796, 4294901760
  %v2162 = vsub.f32 %v1796, %v2161
  %2163 = vmatpush1.msra.mxu0 %v2162
  %2164 = vmatprep.subr.mxu0 0.0
  %v2165 = vand.u32 %v1797, 4294901760
  %v2166 = vsub.f32 %v1797, %v2165
  %2167 = vmatpush1.msra.mxu0 %v2166
  %2168 = vmatprep.subr.mxu0 0.0
  %v2169 = vand.u32 %v1798, 4294901760
  %v2170 = vsub.f32 %v1798, %v2169
  %2171 = vmatpush1.msra.mxu0 %v2170
  %2172 = vmatprep.subr.mxu0 0.0
  %v2173 = vand.u32 %v1799, 4294901760
  %v2174 = vsub.f32 %v1799, %v2173
  %2175 = vmatpush1.msra.mxu0 %v2174
  %2176 = vmatprep.subr.mxu0 0.0
  %v2177 = vand.u32 %v1800, 4294901760
  %v2178 = vsub.f32 %v1800, %v2177
  %2179 = vmatpush1.msra.mxu0 %v2178
  %2180 = vmatprep.subr.mxu0 0.0
  %v2181 = vand.u32 %v1801, 4294901760
  %v2182 = vsub.f32 %v1801, %v2181
  %2183 = vmatpush1.msra.mxu0 %v2182
  %2184 = vmatprep.subr.mxu0 0.0
  %2185 = vmatpush1.msra.mxu0 0.0
  %2186 = vmatprep.subr.mxu0 0.0
  %2187 = vmatpush1.msra.mxu0 0.0
  %2188 = vmatprep.subr.mxu0 0.0
  %2189 = vmatpush1.msra.mxu0 0.0
  %2190 = vmatprep.subr.mxu0 0.0
  %2191 = vmatpush1.msra.mxu0 0.0
  %2192 = vmatprep.subr.mxu0 0.0
  %2193 = vmatpush1.msra.mxu0 0.0
  %2194 = vmatprep.subr.mxu0 0.0
  %2195 = vmatpush1.msra.mxu0 0.0
  %2196 = vmatprep.subr.mxu0 0.0
  %2197 = vmatpush1.msra.mxu0 0.0
  %2198 = vmatprep.subr.mxu0 0.0
  %2199 = vmatpush1.msra.mxu0 0.0
  %2200 = vmatprep.subr.mxu0 0.0
  %2201 = vmatpush1.msra.mxu0 0.0
  %2202 = vmatprep.subr.mxu0 0.0
  %2203 = vmatpush1.msra.mxu0 0.0
  %2204 = vmatprep.subr.mxu0 0.0
  %2205 = vmatpush1.msra.mxu0 0.0
  %2206 = vmatprep.subr.mxu0 0.0
  %2207 = vmatpush1.msra.mxu0 0.0
  %2208 = vmatprep.subr.mxu0 0.0
  %2209 = vmatpush1.msra.mxu0 0.0
  %2210 = vmatprep.subr.mxu0 0.0
  %2211 = vmatpush1.msra.mxu0 0.0
  %2212 = vmatprep.subr.mxu0 0.0
  %2213 = vmatpush1.msra.mxu0 0.0
  %2214 = vmatprep.subr.mxu0 0.0
  %2215 = vmatpush1.msra.mxu0 0.0
  %2216 = vmatprep.mubr.f32.mxu0 0.0
  %v2217 = vand.u32 %v1802, 4294901760
  %v2218 = vsub.f32 %v1802, %v2217
  %2219 = vmatmul.mubr.f32.gmra.mrb[0].mxu0 %v2218
  %v2220 = vpop.f32.mrb[0].mxu0
  %v2221 = vadd.f32 %v2099, %v2220
  %v2222 = vpop.f32.mrb[0].mxu0
  %2223 = vmatprep.mubr.f32.mxu0 0.0
  %v2224 = vand.u32 %v1803, 4294901760
  %v2225 = vsub.f32 %v1803, %v2224
  %2226 = vmatmul.mubr.f32.gmra.mrb[0].mxu0 %v2225
  %v2227 = vpop.f32.mrb[0].mxu0
  %v2228 = vadd.f32 %v2105, %v2227
  %v2229 = vpop.f32.mrb[0].mxu0
  %2230 = vmatprep.mubr.f32.mxu0 0.0
  %v2231 = vand.u32 %v1804, 4294901760
  %v2232 = vsub.f32 %v1804, %v2231
  %2233 = vmatmul.mubr.f32.gmra.mrb[0].mxu0 %v2232
  %v2234 = vpop.f32.mrb[0].mxu0
  %v2235 = vadd.f32 %v2111, %v2234
  %v2236 = vpop.f32.mrb[0].mxu0
  %2237 = vmatprep.mubr.f32.mxu0 0.0
  %v2238 = vand.u32 %v1805, 4294901760
  %v2239 = vsub.f32 %v1805, %v2238
  %2240 = vmatmul.mubr.f32.gmra.mrb[0].mxu0 %v2239
  %v2241 = vpop.f32.mrb[0].mxu0
  %v2242 = vadd.f32 %v2117, %v2241
  %v2243 = vpop.f32.mrb[0].mxu0
  %2244 = vdwg.mxu0
  %2245 = vmatprep.subr.mxu0 0.0
  %v2246 = vand.u32 %v1786, 4294901760
  %2247 = vmatpush1.msra.mxu0 %v2246
  %2248 = vmatprep.subr.mxu0 0.0
  %v2249 = vand.u32 %v1787, 4294901760
  %2250 = vmatpush1.msra.mxu0 %v2249
  %2251 = vmatprep.subr.mxu0 0.0
  %v2252 = vand.u32 %v1788, 4294901760
  %2253 = vmatpush1.msra.mxu0 %v2252
  %2254 = vmatprep.subr.mxu0 0.0
  %v2255 = vand.u32 %v1789, 4294901760
  %2256 = vmatpush1.msra.mxu0 %v2255
  %2257 = vmatprep.subr.mxu0 0.0
  %v2258 = vand.u32 %v1790, 4294901760
  %2259 = vmatpush1.msra.mxu0 %v2258
  %2260 = vmatprep.subr.mxu0 0.0
  %v2261 = vand.u32 %v1791, 4294901760
  %2262 = vmatpush1.msra.mxu0 %v2261
  %2263 = vmatprep.subr.mxu0 0.0
  %v2264 = vand.u32 %v1792, 4294901760
  %2265 = vmatpush1.msra.mxu0 %v2264
  %2266 = vmatprep.subr.mxu0 0.0
  %v2267 = vand.u32 %v1793, 4294901760
  %2268 = vmatpush1.msra.mxu0 %v2267
  %2269 = vmatprep.subr.mxu0 0.0
  %v2270 = vand.u32 %v1794, 4294901760
  %2271 = vmatpush1.msra.mxu0 %v2270
  %2272 = vmatprep.subr.mxu0 0.0
  %v2273 = vand.u32 %v1795, 4294901760
  %2274 = vmatpush1.msra.mxu0 %v2273
  %2275 = vmatprep.subr.mxu0 0.0
  %v2276 = vand.u32 %v1796, 4294901760
  %2277 = vmatpush1.msra.mxu0 %v2276
  %2278 = vmatprep.subr.mxu0 0.0
  %v2279 = vand.u32 %v1797, 4294901760
  %2280 = vmatpush1.msra.mxu0 %v2279
  %2281 = vmatprep.subr.mxu0 0.0
  %v2282 = vand.u32 %v1798, 4294901760
  %2283 = vmatpush1.msra.mxu0 %v2282
  %2284 = vmatprep.subr.mxu0 0.0
  %v2285 = vand.u32 %v1799, 4294901760
  %2286 = vmatpush1.msra.mxu0 %v2285
  %2287 = vmatprep.subr.mxu0 0.0
  %v2288 = vand.u32 %v1800, 4294901760
  %2289 = vmatpush1.msra.mxu0 %v2288
  %2290 = vmatprep.subr.mxu0 0.0
  %v2291 = vand.u32 %v1801, 4294901760
  %2292 = vmatpush1.msra.mxu0 %v2291
  %2293 = vmatprep.subr.mxu0 0.0
  %2294 = vmatpush1.msra.mxu0 0.0
  %2295 = vmatprep.subr.mxu0 0.0
  %2296 = vmatpush1.msra.mxu0 0.0
  %2297 = vmatprep.subr.mxu0 0.0
  %2298 = vmatpush1.msra.mxu0 0.0
  %2299 = vmatprep.subr.mxu0 0.0
  %2300 = vmatpush1.msra.mxu0 0.0
  %2301 = vmatprep.subr.mxu0 0.0
  %2302 = vmatpush1.msra.mxu0 0.0
  %2303 = vmatprep.subr.mxu0 0.0
  %2304 = vmatpush1.msra.mxu0 0.0
  %2305 = vmatprep.subr.mxu0 0.0
  %2306 = vmatpush1.msra.mxu0 0.0
  %2307 = vmatprep.subr.mxu0 0.0
  %2308 = vmatpush1.msra.mxu0 0.0
  %2309 = vmatprep.subr.mxu0 0.0
  %2310 = vmatpush1.msra.mxu0 0.0
  %2311 = vmatprep.subr.mxu0 0.0
  %2312 = vmatpush1.msra.mxu0 0.0
  %2313 = vmatprep.subr.mxu0 0.0
  %2314 = vmatpush1.msra.mxu0 0.0
  %2315 = vmatprep.subr.mxu0 0.0
  %2316 = vmatpush1.msra.mxu0 0.0
  %2317 = vmatprep.subr.mxu0 0.0
  %2318 = vmatpush1.msra.mxu0 0.0
  %2319 = vmatprep.subr.mxu0 0.0
  %2320 = vmatpush1.msra.mxu0 0.0
  %2321 = vmatprep.subr.mxu0 0.0
  %2322 = vmatpush1.msra.mxu0 0.0
  %2323 = vmatprep.subr.mxu0 0.0
  %2324 = vmatpush1.msra.mxu0 0.0
  %2325 = vmatprep.mubr.f32.mxu0 0.0
  %v2326 = vand.u32 %v1802, 4294901760
  %v2327 = vsub.f32 %v1802, %v2326
  %v2328 = vand.u32 %v2327, 4294901760
  %2329 = vmatmul.mubr.f32.gmra.mrb[0].mxu0 %v2328
  %v2330 = vpop.f32.mrb[0].mxu0
  %v2331 = vadd.f32 %v2221, %v2330
  %v2332 = vpop.f32.mrb[0].mxu0
  %2333 = vmatprep.mubr.f32.mxu0 0.0
  %v2334 = vand.u32 %v1803, 4294901760
  %v2335 = vsub.f32 %v1803, %v2334
  %v2336 = vand.u32 %v2335, 4294901760
  %2337 = vmatmul.mubr.f32.gmra.mrb[0].mxu0 %v2336
  %v2338 = vpop.f32.mrb[0].mxu0
  %v2339 = vadd.f32 %v2228, %v2338
  %v2340 = vpop.f32.mrb[0].mxu0
  %2341 = vmatprep.mubr.f32.mxu0 0.0
  %v2342 = vand.u32 %v1804, 4294901760
  %v2343 = vsub.f32 %v1804, %v2342
  %v2344 = vand.u32 %v2343, 4294901760
  %2345 = vmatmul.mubr.f32.gmra.mrb[0].mxu0 %v2344
  %v2346 = vpop.f32.mrb[0].mxu0
  %v2347 = vadd.f32 %v2235, %v2346
  %v2348 = vpop.f32.mrb[0].mxu0
  %2349 = vmatprep.mubr.f32.mxu0 0.0
  %v2350 = vand.u32 %v1805, 4294901760
  %v2351 = vsub.f32 %v1805, %v2350
  %v2352 = vand.u32 %v2351, 4294901760
  %2353 = vmatmul.mubr.f32.gmra.mrb[0].mxu0 %v2352
  %v2354 = vpop.f32.mrb[0].mxu0
  %v2355 = vadd.f32 %v2242, %v2354
  %v2356 = vpop.f32.mrb[0].mxu0
  %2357 = vdwg.mxu0
  %2358 = vmatprep.subr.mxu0 0.0
  %v2359 = vand.u32 %v1786, 4294901760
  %v2360 = vsub.f32 %v1786, %v2359
  %v2361 = vand.u32 %v2360, 4294901760
  %2362 = vmatpush1.msra.mxu0 %v2361
  %2363 = vmatprep.subr.mxu0 0.0
  %v2364 = vand.u32 %v1787, 4294901760
  %v2365 = vsub.f32 %v1787, %v2364
  %v2366 = vand.u32 %v2365, 4294901760
  %2367 = vmatpush1.msra.mxu0 %v2366
  %2368 = vmatprep.subr.mxu0 0.0
  %v2369 = vand.u32 %v1788, 4294901760
  %v2370 = vsub.f32 %v1788, %v2369
  %v2371 = vand.u32 %v2370, 4294901760
  %2372 = vmatpush1.msra.mxu0 %v2371
  %2373 = vmatprep.subr.mxu0 0.0
  %v2374 = vand.u32 %v1789, 4294901760
  %v2375 = vsub.f32 %v1789, %v2374
  %v2376 = vand.u32 %v2375, 4294901760
  %2377 = vmatpush1.msra.mxu0 %v2376
  %2378 = vmatprep.subr.mxu0 0.0
  %v2379 = vand.u32 %v1790, 4294901760
  %v2380 = vsub.f32 %v1790, %v2379
  %v2381 = vand.u32 %v2380, 4294901760
  %2382 = vmatpush1.msra.mxu0 %v2381
  %2383 = vmatprep.subr.mxu0 0.0
  %v2384 = vand.u32 %v1791, 4294901760
  %v2385 = vsub.f32 %v1791, %v2384
  %v2386 = vand.u32 %v2385, 4294901760
  %2387 = vmatpush1.msra.mxu0 %v2386
  %2388 = vmatprep.subr.mxu0 0.0
  %v2389 = vand.u32 %v1792, 4294901760
  %v2390 = vsub.f32 %v1792, %v2389
  %v2391 = vand.u32 %v2390, 4294901760
  %2392 = vmatpush1.msra.mxu0 %v2391
  %2393 = vmatprep.subr.mxu0 0.0
  %v2394 = vand.u32 %v1793, 4294901760
  %v2395 = vsub.f32 %v1793, %v2394
  %v2396 = vand.u32 %v2395, 4294901760
  %2397 = vmatpush1.msra.mxu0 %v2396
  %2398 = vmatprep.subr.mxu0 0.0
  %v2399 = vand.u32 %v1794, 4294901760
  %v2400 = vsub.f32 %v1794, %v2399
  %v2401 = vand.u32 %v2400, 4294901760
  %2402 = vmatpush1.msra.mxu0 %v2401
  %2403 = vmatprep.subr.mxu0 0.0
  %v2404 = vand.u32 %v1795, 4294901760
  %v2405 = vsub.f32 %v1795, %v2404
  %v2406 = vand.u32 %v2405, 4294901760
  %2407 = vmatpush1.msra.mxu0 %v2406
  %2408 = vmatprep.subr.mxu0 0.0
  %v2409 = vand.u32 %v1796, 4294901760
  %v2410 = vsub.f32 %v1796, %v2409
  %v2411 = vand.u32 %v2410, 4294901760
  %2412 = vmatpush1.msra.mxu0 %v2411
  %2413 = vmatprep.subr.mxu0 0.0
  %v2414 = vand.u32 %v1797, 4294901760
  %v2415 = vsub.f32 %v1797, %v2414
  %v2416 = vand.u32 %v2415, 4294901760
  %2417 = vmatpush1.msra.mxu0 %v2416
  %2418 = vmatprep.subr.mxu0 0.0
  %v2419 = vand.u32 %v1798, 4294901760
  %v2420 = vsub.f32 %v1798, %v2419
  %v2421 = vand.u32 %v2420, 4294901760
  %2422 = vmatpush1.msra.mxu0 %v2421
  %2423 = vmatprep.subr.mxu0 0.0
  %v2424 = vand.u32 %v1799, 4294901760
  %v2425 = vsub.f32 %v1799, %v2424
  %v2426 = vand.u32 %v2425, 4294901760
  %2427 = vmatpush1.msra.mxu0 %v2426
  %2428 = vmatprep.subr.mxu0 0.0
  %v2429 = vand.u32 %v1800, 4294901760
  %v2430 = vsub.f32 %v1800, %v2429
  %v2431 = vand.u32 %v2430, 4294901760
  %2432 = vmatpush1.msra.mxu0 %v2431
  %2433 = vmatprep.subr.mxu0 0.0
  %v2434 = vand.u32 %v1801, 4294901760
  %v2435 = vsub.f32 %v1801, %v2434
  %v2436 = vand.u32 %v2435, 4294901760
  %2437 = vmatpush1.msra.mxu0 %v2436
  %2438 = vmatprep.subr.mxu0 0.0
  %2439 = vmatpush1.msra.mxu0 0.0
  %2440 = vmatprep.subr.mxu0 0.0
  %2441 = vmatpush1.msra.mxu0 0.0
  %2442 = vmatprep.subr.mxu0 0.0
  %2443 = vmatpush1.msra.mxu0 0.0
  %2444 = vmatprep.subr.mxu0 0.0
  %2445 = vmatpush1.msra.mxu0 0.0
  %2446 = vmatprep.subr.mxu0 0.0
  %2447 = vmatpush1.msra.mxu0 0.0
  %2448 = vmatprep.subr.mxu0 0.0
  %2449 = vmatpush1.msra.mxu0 0.0
  %2450 = vmatprep.subr.mxu0 0.0
  %2451 = vmatpush1.msra.mxu0 0.0
  %2452 = vmatprep.subr.mxu0 0.0
  %2453 = vmatpush1.msra.mxu0 0.0
  %2454 = vmatprep.subr.mxu0 0.0
  %2455 = vmatpush1.msra.mxu0 0.0
  %2456 = vmatprep.subr.mxu0 0.0
  %2457 = vmatpush1.msra.mxu0 0.0
  %2458 = vmatprep.subr.mxu0 0.0
  %2459 = vmatpush1.msra.mxu0 0.0
  %2460 = vmatprep.subr.mxu0 0.0
  %2461 = vmatpush1.msra.mxu0 0.0
  %2462 = vmatprep.subr.mxu0 0.0
  %2463 = vmatpush1.msra.mxu0 0.0
  %2464 = vmatprep.subr.mxu0 0.0
  %2465 = vmatpush1.msra.mxu0 0.0
  %2466 = vmatprep.subr.mxu0 0.0
  %2467 = vmatpush1.msra.mxu0 0.0
  %2468 = vmatprep.subr.mxu0 0.0
  %2469 = vmatpush1.msra.mxu0 0.0
  %2470 = vmatprep.mubr.f32.mxu0 0.0
  %v2471 = vand.u32 %v1802, 4294901760
  %2472 = vmatmul.mubr.f32.gmra.mrb[0].mxu0 %v2471
  %v2473 = vpop.f32.mrb[0].mxu0
  %v2474 = vadd.f32 %v2331, %v2473
  %v2475 = vpop.f32.mrb[0].mxu0
  %2476 = vmatprep.mubr.f32.mxu0 0.0
  %v2477 = vand.u32 %v1803, 4294901760
  %2478 = vmatmul.mubr.f32.gmra.mrb[0].mxu0 %v2477
  %v2479 = vpop.f32.mrb[0].mxu0
  %v2480 = vadd.f32 %v2339, %v2479
  %v2481 = vpop.f32.mrb[0].mxu0
  %2482 = vmatprep.mubr.f32.mxu0 0.0
  %v2483 = vand.u32 %v1804, 4294901760
  %2484 = vmatmul.mubr.f32.gmra.mrb[0].mxu0 %v2483
  %v2485 = vpop.f32.mrb[0].mxu0
  %v2486 = vadd.f32 %v2347, %v2485
  %v2487 = vpop.f32.mrb[0].mxu0
  %2488 = vmatprep.mubr.f32.mxu0 0.0
  %v2489 = vand.u32 %v1805, 4294901760
  %2490 = vmatmul.mubr.f32.gmra.mrb[0].mxu0 %v2489
  %v2491 = vpop.f32.mrb[0].mxu0
  %v2492 = vadd.f32 %v2355, %v2491
  %v2493 = vpop.f32.mrb[0].mxu0
  %2494 = vdwg.mxu0
  %2495 = vmatprep.subr.mxu0 0.0
  %v2496 = vand.u32 %v1786, 4294901760
  %2497 = vmatpush1.msra.mxu0 %v2496
  %2498 = vmatprep.subr.mxu0 0.0
  %v2499 = vand.u32 %v1787, 4294901760
  %2500 = vmatpush1.msra.mxu0 %v2499
  %2501 = vmatprep.subr.mxu0 0.0
  %v2502 = vand.u32 %v1788, 4294901760
  %2503 = vmatpush1.msra.mxu0 %v2502
  %2504 = vmatprep.subr.mxu0 0.0
  %v2505 = vand.u32 %v1789, 4294901760
  %2506 = vmatpush1.msra.mxu0 %v2505
  %2507 = vmatprep.subr.mxu0 0.0
  %v2508 = vand.u32 %v1790, 4294901760
  %2509 = vmatpush1.msra.mxu0 %v2508
  %2510 = vmatprep.subr.mxu0 0.0
  %v2511 = vand.u32 %v1791, 4294901760
  %2512 = vmatpush1.msra.mxu0 %v2511
  %2513 = vmatprep.subr.mxu0 0.0
  %v2514 = vand.u32 %v1792, 4294901760
  %2515 = vmatpush1.msra.mxu0 %v2514
  %2516 = vmatprep.subr.mxu0 0.0
  %v2517 = vand.u32 %v1793, 4294901760
  %2518 = vmatpush1.msra.mxu0 %v2517
  %2519 = vmatprep.subr.mxu0 0.0
  %v2520 = vand.u32 %v1794, 4294901760
  %2521 = vmatpush1.msra.mxu0 %v2520
  %2522 = vmatprep.subr.mxu0 0.0
  %v2523 = vand.u32 %v1795, 4294901760
  %2524 = vmatpush1.msra.mxu0 %v2523
  %2525 = vmatprep.subr.mxu0 0.0
  %v2526 = vand.u32 %v1796, 4294901760
  %2527 = vmatpush1.msra.mxu0 %v2526
  %2528 = vmatprep.subr.mxu0 0.0
  %v2529 = vand.u32 %v1797, 4294901760
  %2530 = vmatpush1.msra.mxu0 %v2529
  %2531 = vmatprep.subr.mxu0 0.0
  %v2532 = vand.u32 %v1798, 4294901760
  %2533 = vmatpush1.msra.mxu0 %v2532
  %2534 = vmatprep.subr.mxu0 0.0
  %v2535 = vand.u32 %v1799, 4294901760
  %2536 = vmatpush1.msra.mxu0 %v2535
  %2537 = vmatprep.subr.mxu0 0.0
  %v2538 = vand.u32 %v1800, 4294901760
  %2539 = vmatpush1.msra.mxu0 %v2538
  %2540 = vmatprep.subr.mxu0 0.0
  %v2541 = vand.u32 %v1801, 4294901760
  %2542 = vmatpush1.msra.mxu0 %v2541
  %2543 = vmatprep.subr.mxu0 0.0
  %2544 = vmatpush1.msra.mxu0 0.0
  %2545 = vmatprep.subr.mxu0 0.0
  %2546 = vmatpush1.msra.mxu0 0.0
  %2547 = vmatprep.subr.mxu0 0.0
  %2548 = vmatpush1.msra.mxu0 0.0
  %2549 = vmatprep.subr.mxu0 0.0
  %2550 = vmatpush1.msra.mxu0 0.0
  %2551 = vmatprep.subr.mxu0 0.0
  %2552 = vmatpush1.msra.mxu0 0.0
  %2553 = vmatprep.subr.mxu0 0.0
  %2554 = vmatpush1.msra.mxu0 0.0
  %2555 = vmatprep.subr.mxu0 0.0
  %2556 = vmatpush1.msra.mxu0 0.0
  %2557 = vmatprep.subr.mxu0 0.0
  %2558 = vmatpush1.msra.mxu0 0.0
  %2559 = vmatprep.subr.mxu0 0.0
  %2560 = vmatpush1.msra.mxu0 0.0
  %2561 = vmatprep.subr.mxu0 0.0
  %2562 = vmatpush1.msra.mxu0 0.0
  %2563 = vmatprep.subr.mxu0 0.0
  %2564 = vmatpush1.msra.mxu0 0.0
  %2565 = vmatprep.subr.mxu0 0.0
  %2566 = vmatpush1.msra.mxu0 0.0
  %2567 = vmatprep.subr.mxu0 0.0
  %2568 = vmatpush1.msra.mxu0 0.0
  %2569 = vmatprep.subr.mxu0 0.0
  %2570 = vmatpush1.msra.mxu0 0.0
  %2571 = vmatprep.subr.mxu0 0.0
  %2572 = vmatpush1.msra.mxu0 0.0
  %2573 = vmatprep.subr.mxu0 0.0
  %2574 = vmatpush1.msra.mxu0 0.0
  %2575 = vmatprep.mubr.f32.mxu0 0.0
  %v2576 = vand.u32 %v1802, 4294901760
  %2577 = vmatmul.mubr.f32.gmra.mrb[0].mxu0 %v2576
  %v2578 = vpop.f32.mrb[0].mxu0
  %v2579 = vadd.f32 %v2474, %v2578
  %v2580 = vpop.f32.mrb[0].mxu0
  %2581 = vmatprep.mubr.f32.mxu0 0.0
  %v2582 = vand.u32 %v1803, 4294901760
  %2583 = vmatmul.mubr.f32.gmra.mrb[0].mxu0 %v2582
  %v2584 = vpop.f32.mrb[0].mxu0
  %v2585 = vadd.f32 %v2480, %v2584
  %v2586 = vpop.f32.mrb[0].mxu0
  %2587 = vmatprep.mubr.f32.mxu0 0.0
  %v2588 = vand.u32 %v1804, 4294901760
  %2589 = vmatmul.mubr.f32.gmra.mrb[0].mxu0 %v2588
  %v2590 = vpop.f32.mrb[0].mxu0
  %v2591 = vadd.f32 %v2486, %v2590
  %v2592 = vpop.f32.mrb[0].mxu0
  %2593 = vmatprep.mubr.f32.mxu0 0.0
  %v2594 = vand.u32 %v1805, 4294901760
  %2595 = vmatmul.mubr.f32.gmra.mrb[0].mxu0 %v2594
  %v2596 = vpop.f32.mrb[0].mxu0
  %v2597 = vadd.f32 %v2492, %v2596
  %v2598 = vpop.f32.mrb[0].mxu0
  %2599 = vdwg.mxu0
  %vm2600 = vcmp.ge.f32.partialorder %v2579, 0.0
  %vm2601 = vcmp.ge.f32.partialorder %v2585, 0.0
  %vm2602 = vcmp.ge.f32.partialorder %v2591, 0.0
  %vm2603 = vcmp.ge.f32.partialorder %v2597, 0.0
  %v2604 = vmul.f32 %v2579, 0.01
  %v2605 = vmul.f32 %v2585, 0.01
  %v2606 = vmul.f32 %v2591, 0.01
  %v2607 = vmul.f32 %v2597, 0.01
  %v2608 = vsel %vm2600, %v2579, %v2604
  %v2609 = vsel %vm2601, %v2585, %v2605
  %v2610 = vsel %vm2602, %v2591, %v2606
  %v2611 = vsel %vm2603, %v2597, %v2607
  %2612 = vst [vmem:[%s4] sm:$0xff] %v2608
  %2613 = vst [vmem:[%s4 + $0x8] sm:$0xff] %v2609
  %2614 = vst [vmem:[%s4 + $0x10] sm:$0xff] %v2610
  %2615 = vst [vmem:[%s4 + $0x18] sm:$0xff] %v2611
  // Predicated region
  $region18: #{embedding_layer_pallas.1} parent=0 // pred_check
    _
  $region19: #{embedding_layer_pallas.1} parent=0 // pred_check_branch
    %2617 = sbr.rel (0) target = $region21
  $region20: #{embedding_layer_pallas.1} parent=0 // pred_region
    _
  $region21: #{embedding_layer_pallas.1} parent=0 // pred_fallthru
    _
  // Predicated region
  $region22: #{embedding_layer_pallas.1} parent=0 // pred_check
    _
  $region23: #{embedding_layer_pallas.1} parent=0 // pred_check_branch
    %2619 = sbr.rel (0) target = $region25
  $region24: #{embedding_layer_pallas.1} parent=0 // pred_region
    _
  $region25: #{embedding_layer_pallas.1} parent=0 // pred_fallthru
    _

</llo_original>
